<compile_context>
chip_gen: v6e
topology: v6e:2x2x1
jax: 0.10.0
libtpu: 0.0.40
codegen_flags: <defaults>
</compile_context>

<pallas_src>
import functools
import math

import jax
import jax.numpy as jnp
from jax import lax
from jax.experimental import pallas as pl
from jax.experimental.pallas import tpu as pltpu


# y = x @ W^T for a PyTorch-layout weight W of shape (out_features, in_features):
# contract x dim 1 with W dim 1. The MXU consumes the transposed RHS natively,
# so no transpose is ever materialized.
_DN_XWT = (((1,), (1,)), ((), ()))


def _tpu_topology():
    """Return (tensorcores_per_chip, physical_vmem_bytes_per_tc), conservatively."""
    try:
        kind = jax.devices()[0].device_kind.lower()
    except Exception:
        kind = ""
    if "v7" in kind or "7x" in kind:
        return 2, 64 * 2**20       # v7x: 2 TCs / chip, 64 MiB VMEM per TC
    return 1, 128 * 2**20          # v5e / v6e: 1 TC, 128 MiB VMEM


def _mcb_kernel(q_ref, k_ref, v_ref, wq_ref, wk_ref, wv_ref, wo_ref, o_ref, *,
                num_heads, batch_block, q_len, kv_len, scale):
    # Blocks: q_ref (Bb*Lq, D), k_ref/v_ref (Bb*Lkv, D), weights (D, D) resident
    # across the grid, o_ref (Bb*Lq, D). No VMEM scratch.
    D = q_ref.shape[-1]
    hd = D // num_heads

    # --- Q/K/V projections: one wide MXU matmul each, bf16 in / f32 acc ------
    q = lax.dot_general(q_ref[...], wq_ref[...], _DN_XWT,
                        preferred_element_type=jnp.float32)
    k = lax.dot_general(k_ref[...], wk_ref[...], _DN_XWT,
                        preferred_element_type=jnp.float32)
    v = lax.dot_general(v_ref[...], wv_ref[...], _DN_XWT,
                        preferred_element_type=jnp.float32)

    # 1/sqrt(head_dim) post-matmul in f32: one VPU multiply, hidden under MXU
    # slack (and not pre-quantized into bf16 weights in the wrapper).
    q = q * scale

    # Cast to bf16 ONCE; expose the per-step batch dim for batched attention.
    qb = q.reshape(batch_block, q_len, D).astype(jnp.bfloat16)
    kb = k.reshape(batch_block, kv_len, D).astype(jnp.bfloat16)
    vb = v.reshape(batch_block, kv_len, D).astype(jnp.bfloat16)

    # --- Per-head attention ---------------------------------------------------
    # Heads are static lane slices of the already-bf16 projections; each head
    # does one batched score matmul and one batched PV matmul. Head outputs
    # stay in vregs and are concatenated lane-wise (no masked VMEM stores).
    head_outs = []
    for h in range(num_heads):
        sl = slice(h * hd, (h + 1) * hd)
        qh, kh, vh = qb[:, :, sl], kb[:, :, sl], vb[:, :, sl]

        s = jnp.einsum('bqd,bkd->bqk', qh, kh,
                       preferred_element_type=jnp.float32)
        s = s - jnp.max(s, axis=-1, keepdims=True)        # stable softmax (f32)
        p = jnp.exp(s)
        p = p * pl.reciprocal(jnp.sum(p, axis=-1, keepdims=True), approx=True)
        # TODO(synk): dropout on p omitted (identity at inference).

        head_outs.append(
            jnp.einsum('bqk,bkd->bqd', p.astype(jnp.bfloat16), vh,
                       preferred_element_type=jnp.float32))

    attn = jnp.concatenate(head_outs, axis=-1)            # (Bb, Lq, D) in vregs

    # --- Output projection + flattened (sublane-dense) store ------------------
    attn2 = attn.reshape(batch_block * q_len, D).astype(jnp.bfloat16)
    out = lax.dot_general(attn2, wo_ref[...], _DN_XWT,
                          preferred_element_type=jnp.float32)
    o_ref[...] = out.astype(o_ref.dtype)


def mcb_forward(query, key, value, params, num_heads, *,
                batch_block=None, out_dtype=jnp.float32):
    """Pallas implementation of MCB.forward (dropout = identity, bias=False).

    out_dtype=jnp.bfloat16 halves output writeback; f32 default matches the
    PyTorch module's output dtype.
    """
    B, Lq, D = query.shape
    _, Lkv, _ = key.shape
    assert value.shape == key.shape
    assert D % num_heads == 0
    hd = D // num_heads
    scale = 1.0 / math.sqrt(hd)

    num_tc, phys_vmem = _tpu_topology()

    # Batch block: one big step on single-TC chips (amortizes the ~0.35 us/step
    # grid overhead and fills sublanes); >=2 parallel steps on v7x (2 TCs).
    if batch_block is None:
        batch_block = max(1, pl.cdiv(B, num_tc))
    batch_block = min(batch_block, B)

    itemsize_out = jnp.dtype(out_dtype).itemsize

    def vmem_bytes(bb):
        rows_q, rows_kv = bb * Lq, bb * Lkv
        act_in = 2 * 2 * (rows_q + 2 * rows_kv) * D        # bf16 inputs, double-buffered
        act_out = 2 * rows_q * D * itemsize_out            # output block, double-buffered
        weights = 2 * 4 * D * D * 2                        # 4 bf16 weights, double-buffered
        return act_in + act_out + weights
        # TODO(synk): pipeline_mode=pl.Buffered(1) on the constant-index weight
        # specs would halve the weight term as D grows.

    # Shrink the block until it fits comfortably in this generation's VMEM.
    budget = int(phys_vmem * 0.7)
    while batch_block > 1 and vmem_bytes(batch_block) > budget:
        batch_block = pl.cdiv(batch_block, 2)

    grid_b = pl.cdiv(B, batch_block)
    Bp = grid_b * batch_block

    # Explicit, generation-aware scoped-VMEM limit instead of a hard assert.
    vmem_limit = int(min(max(1.25 * vmem_bytes(batch_block), 32 * 2**20),
                         int(phys_vmem * 0.9)))

    cdt = jnp.bfloat16  # MXU-native compute dtype (f32 accumulation inside)
    xq = query.astype(cdt)
    xk = key.astype(cdt)
    xv = value.astype(cdt)
    if Bp != B:  # pad batch so it divides evenly into batch blocks
        pad = ((0, Bp - B), (0, 0), (0, 0))
        xq = jnp.pad(xq, pad)
        xk = jnp.pad(xk, pad)
        xv = jnp.pad(xv, pad)
    # Flatten (batch, seq) into rows: projections & output store see dense
    # (rows, D) slabs; per-batch separation is recovered inside the kernel.
    xq = xq.reshape(Bp * Lq, D)
    xk = xk.reshape(Bp * Lkv, D)
    xv = xv.reshape(Bp * Lkv, D)

    # PyTorch nn.Linear weights are (out_features, in_features); no pre-scaling.
    # TODO(synk): in a real model, store weights pre-cast to bf16 to avoid this
    # per-call wrapper cast.
    wq = params["wq"].astype(cdt)
    wk = params["wk"].astype(cdt)
    wv = params["wv"].astype(cdt)
    wo = params["wo"].astype(cdt)

    flops = (2 * D * D * (2 * B * Lq + 2 * B * Lkv)        # four projections
             + 4 * B * num_heads * Lq * Lkv * hd)          # scores + PV
    cost = pl.CostEstimate(
        flops=flops,
        transcendentals=B * num_heads * Lq * Lkv,
        bytes_accessed=(xq.size + xk.size + xv.size + 4 * D * D) * 2
                       + Bp * Lq * D * itemsize_out,
    )

    rows_q = batch_block * Lq
    rows_kv = batch_block * Lkv
    kernel = functools.partial(
        _mcb_kernel, num_heads=num_heads, batch_block=batch_block,
        q_len=Lq, kv_len=Lkv, scale=scale)

    out = pl.pallas_call(
        kernel,
        out_shape=jax.ShapeDtypeStruct((Bp * Lq, D), out_dtype),
        grid=(grid_b,),
        in_specs=[
            pl.BlockSpec((rows_q, D), lambda b: (b, 0)),
            pl.BlockSpec((rows_kv, D), lambda b: (b, 0)),
            pl.BlockSpec((rows_kv, D), lambda b: (b, 0)),
            pl.BlockSpec((D, D), lambda b: (0, 0)),   # weights: fetched once, stay resident
            pl.BlockSpec((D, D), lambda b: (0, 0)),
            pl.BlockSpec((D, D), lambda b: (0, 0)),
            pl.BlockSpec((D, D), lambda b: (0, 0)),
        ],
        out_specs=pl.BlockSpec((rows_q, D), lambda b: (b, 0)),
        compiler_params=pltpu.CompilerParams(
            dimension_semantics=("parallel",),
            vmem_limit_bytes=vmem_limit,
        ),
        cost_estimate=cost,
    )(xq, xk, xv, wq, wk, wv, wo)

    out = out.reshape(Bp, Lq, D)
    return out[:B] if Bp != B else out


# ---------------------------------------------------------------------------
# Pure-JAX f32 reference (mirrors the PyTorch module, dropout = identity)
# ---------------------------------------------------------------------------
def mcb_reference(query, key, value, params, num_heads):
    B, L, D = query.shape
    hd = D // num_heads
    wq, wk, wv, wo = params["wq"], params["wk"], params["wv"], params["wo"]

    q = (query @ wq.T).reshape(B, L, num_heads, hd).transpose(0, 2, 1, 3)
    k = (key @ wk.T).reshape(B, -1, num_heads, hd).transpose(0, 2, 3, 1)
    v = (value @ wv.T).reshape(B, -1, num_heads, hd).transpose(0, 2, 1, 3)
    scores = (q @ k) / math.sqrt(hd)
    scores = jax.nn.softmax(scores, axis=-1)
    out = (scores @ v).transpose(0, 2, 1, 3).reshape(B, L, D)
    return out @ wo.T


# ---------------------------------------------------------------------------
# Main
# ---------------------------------------------------------------------------
if __name__ == "__main__":
    B, L, D, H = 2, 8, 32, 4  # batch, seq, input_size, num_heads

    key_root = jax.random.PRNGKey(0)
    k_in, k_q, k_k, k_v, k_o = jax.random.split(key_root, 5)
    kq, kk, kv = jax.random.split(k_in, 3)

    query = jax.random.normal(kq, (B, L, D), dtype=jnp.float32)
    key = jax.random.normal(kk, (B, L, D), dtype=jnp.float32)
    value = jax.random.normal(kv, (B, L, D), dtype=jnp.float32)

    # nn.Linear weights have shape (out_features, in_features) = (D, D)
    bound = 1.0 / math.sqrt(D)
    params = {
        "wq": jax.random.uniform(k_q, (D, D), jnp.float32, -bound, bound),
        "wk": jax.random.uniform(k_k, (D, D), jnp.float32, -bound, bound),
        "wv": jax.random.uniform(k_v, (D, D), jnp.float32, -bound, bound),
        "wo": jax.random.uniform(k_o, (D, D), jnp.float32, -bound, bound),
    }

    out = mcb_forward(query, key, value, params, num_heads=H)
    out = jax.block_until_ready(out)

    ref = mcb_reference(query, key, value, params, num_heads=H)
    assert out.shape == (B, L, D)
    # bf16 MXU inputs (f32 accumulation) -> slightly looser tolerance than pure f32.
    assert jnp.allclose(out, ref, atol=2e-2, rtol=2e-2)

    print("KERNEL_OK")
</pallas_src>

<mosaic_0001>
module attributes {stable_mosaic.version = 11 : i64} {
  func.func @_mcb_kernel(%arg0: i32, %arg1: memref<16x32xbf16, #tpu.memory_space<vmem>>, %arg2: memref<16x32xbf16, #tpu.memory_space<vmem>>, %arg3: memref<16x32xbf16, #tpu.memory_space<vmem>>, %arg4: memref<32x32xbf16, #tpu.memory_space<vmem>>, %arg5: memref<32x32xbf16, #tpu.memory_space<vmem>>, %arg6: memref<32x32xbf16, #tpu.memory_space<vmem>>, %arg7: memref<32x32xbf16, #tpu.memory_space<vmem>>, %arg8: memref<16x32xf32, #tpu.memory_space<vmem>>) attributes {dimension_semantics = [#tpu.dimension_semantics<parallel>], iteration_bounds = array<i64: 1>, scalar_prefetch = 0 : i64, scratch_operands = 0 : i64, tpu.core_type = #tpu.core_type<tc>, window_params = [{transform_indices = @transform_0, window_bounds = array<i64: 16, 32>}, {transform_indices = @transform_1, window_bounds = array<i64: 16, 32>}, {transform_indices = @transform_2, window_bounds = array<i64: 16, 32>}, {pipeline_mode = #tpu.pipeline_mode<synchronous>, transform_indices = @transform_3, window_bounds = array<i64: 32, 32>}, {pipeline_mode = #tpu.pipeline_mode<synchronous>, transform_indices = @transform_4, window_bounds = array<i64: 32, 32>}, {pipeline_mode = #tpu.pipeline_mode<synchronous>, transform_indices = @transform_5, window_bounds = array<i64: 32, 32>}, {pipeline_mode = #tpu.pipeline_mode<synchronous>, transform_indices = @transform_6, window_bounds = array<i64: 32, 32>}, {transform_indices = @transform_7, window_bounds = array<i64: 16, 32>}]} {
    %c0 = arith.constant 0 : index
    %c0_0 = arith.constant 0 : index
    %0 = vector.load %arg1[%c0, %c0_0] : memref<16x32xbf16, #tpu.memory_space<vmem>>, vector<16x32xbf16>
    %c0_1 = arith.constant 0 : index
    %c0_2 = arith.constant 0 : index
    %1 = vector.load %arg4[%c0_1, %c0_2] : memref<32x32xbf16, #tpu.memory_space<vmem>>, vector<32x32xbf16>
    %cst = arith.constant dense<0.000000e+00> : vector<16x32xf32>
    %2 = tpu.matmul %0, %1, %cst {dimension_numbers = #tpu.dot_dimension_numbers<[1], [1], [0], [0], [0, 0, 1, 0], [], []>} : vector<16x32xbf16>, vector<32x32xbf16>, vector<16x32xf32> -> vector<16x32xf32>
    %c0_3 = arith.constant 0 : index
    %c0_4 = arith.constant 0 : index
    %3 = vector.load %arg2[%c0_3, %c0_4] : memref<16x32xbf16, #tpu.memory_space<vmem>>, vector<16x32xbf16>
    %c0_5 = arith.constant 0 : index
    %c0_6 = arith.constant 0 : index
    %4 = vector.load %arg5[%c0_5, %c0_6] : memref<32x32xbf16, #tpu.memory_space<vmem>>, vector<32x32xbf16>
    %cst_7 = arith.constant dense<0.000000e+00> : vector<16x32xf32>
    %5 = tpu.matmul %3, %4, %cst_7 {dimension_numbers = #tpu.dot_dimension_numbers<[1], [1], [0], [0], [0, 0, 1, 0], [], []>} : vector<16x32xbf16>, vector<32x32xbf16>, vector<16x32xf32> -> vector<16x32xf32>
    %c0_8 = arith.constant 0 : index
    %c0_9 = arith.constant 0 : index
    %6 = vector.load %arg3[%c0_8, %c0_9] : memref<16x32xbf16, #tpu.memory_space<vmem>>, vector<16x32xbf16>
    %c0_10 = arith.constant 0 : index
    %c0_11 = arith.constant 0 : index
    %7 = vector.load %arg6[%c0_10, %c0_11] : memref<32x32xbf16, #tpu.memory_space<vmem>>, vector<32x32xbf16>
    %cst_12 = arith.constant dense<0.000000e+00> : vector<16x32xf32>
    %8 = tpu.matmul %6, %7, %cst_12 {dimension_numbers = #tpu.dot_dimension_numbers<[1], [1], [0], [0], [0, 0, 1, 0], [], []>} : vector<16x32xbf16>, vector<32x32xbf16>, vector<16x32xf32> -> vector<16x32xf32>
    %cst_13 = arith.constant 0.353553385 : f32
    %9 = vector.broadcast %cst_13 : f32 to vector<16x32xf32>
    %10 = arith.mulf %2, %9 : vector<16x32xf32>
    %11 = vector.shape_cast %10 : vector<16x32xf32> to vector<2x8x32xf32>
    %12 = arith.truncf %11 : vector<2x8x32xf32> to vector<2x8x32xbf16>
    %13 = vector.shape_cast %5 : vector<16x32xf32> to vector<2x8x32xf32>
    %14 = arith.truncf %13 : vector<2x8x32xf32> to vector<2x8x32xbf16>
    %15 = vector.shape_cast %8 : vector<16x32xf32> to vector<2x8x32xf32>
    %16 = arith.truncf %15 : vector<2x8x32xf32> to vector<2x8x32xbf16>
    %17 = vector.extract_strided_slice %12 {offsets = [0, 0, 0], sizes = [2, 8, 8], strides = [1, 1, 1]} : vector<2x8x32xbf16> to vector<2x8x8xbf16>
    %18 = vector.extract_strided_slice %14 {offsets = [0, 0, 0], sizes = [2, 8, 8], strides = [1, 1, 1]} : vector<2x8x32xbf16> to vector<2x8x8xbf16>
    %19 = vector.extract_strided_slice %16 {offsets = [0, 0, 0], sizes = [2, 8, 8], strides = [1, 1, 1]} : vector<2x8x32xbf16> to vector<2x8x8xbf16>
    "tpu.trace_start"() <{level = 10 : i32, message = "bqd,bkd->bqk"}> : () -> ()
    %cst_14 = arith.constant dense<0.000000e+00> : vector<2x8x8xf32>
    %20 = tpu.matmul %17, %18, %cst_14 {dimension_numbers = #tpu.dot_dimension_numbers<[2], [2], [1], [1], [0, 0, 0, 1, 1, 1], [0], [0]>} : vector<2x8x8xbf16>, vector<2x8x8xbf16>, vector<2x8x8xf32> -> vector<2x8x8xf32>
    "tpu.trace_stop"() : () -> ()
    %cst_15 = arith.constant dense<0xFF800000> : vector<2x8xf32>
    %21 = vector.multi_reduction <maximumf>, %20, %cst_15 [2] : vector<2x8x8xf32> to vector<2x8xf32>
    %22 = vector.shape_cast %21 : vector<2x8xf32> to vector<2x8x1xf32>
    %23 = vector.broadcast %22 : vector<2x8x1xf32> to vector<2x8x8xf32>
    %24 = arith.subf %20, %23 : vector<2x8x8xf32>
    %25 = math.exp %24 : vector<2x8x8xf32>
    %cst_16 = arith.constant dense<0.000000e+00> : vector<2x8xf32>
    %26 = vector.multi_reduction <add>, %25, %cst_16 [2] : vector<2x8x8xf32> to vector<2x8xf32>
    %27 = vector.shape_cast %26 : vector<2x8xf32> to vector<2x8x1xf32>
    %28 = tpu.reciprocal %27 {approx = true} : vector<2x8x1xf32> -> vector<2x8x1xf32>
    %29 = vector.broadcast %28 : vector<2x8x1xf32> to vector<2x8x8xf32>
    %30 = arith.mulf %25, %29 : vector<2x8x8xf32>
    %31 = arith.truncf %30 : vector<2x8x8xf32> to vector<2x8x8xbf16>
    "tpu.trace_start"() <{level = 10 : i32, message = "bqk,bkd->bqd"}> : () -> ()
    %cst_17 = arith.constant dense<0.000000e+00> : vector<2x8x8xf32>
    %32 = tpu.matmul %31, %19, %cst_17 {dimension_numbers = #tpu.dot_dimension_numbers<[2], [1], [1], [2], [0, 0, 0, 1, 1, 2], [0], [0]>} : vector<2x8x8xbf16>, vector<2x8x8xbf16>, vector<2x8x8xf32> -> vector<2x8x8xf32>
    "tpu.trace_stop"() : () -> ()
    %33 = vector.extract_strided_slice %12 {offsets = [0, 0, 8], sizes = [2, 8, 8], strides = [1, 1, 1]} : vector<2x8x32xbf16> to vector<2x8x8xbf16>
    %34 = vector.extract_strided_slice %14 {offsets = [0, 0, 8], sizes = [2, 8, 8], strides = [1, 1, 1]} : vector<2x8x32xbf16> to vector<2x8x8xbf16>
    %35 = vector.extract_strided_slice %16 {offsets = [0, 0, 8], sizes = [2, 8, 8], strides = [1, 1, 1]} : vector<2x8x32xbf16> to vector<2x8x8xbf16>
    "tpu.trace_start"() <{level = 10 : i32, message = "bqd,bkd->bqk"}> : () -> ()
    %cst_18 = arith.constant dense<0.000000e+00> : vector<2x8x8xf32>
    %36 = tpu.matmul %33, %34, %cst_18 {dimension_numbers = #tpu.dot_dimension_numbers<[2], [2], [1], [1], [0, 0, 0, 1, 1, 1], [0], [0]>} : vector<2x8x8xbf16>, vector<2x8x8xbf16>, vector<2x8x8xf32> -> vector<2x8x8xf32>
    "tpu.trace_stop"() : () -> ()
    %cst_19 = arith.constant dense<0xFF800000> : vector<2x8xf32>
    %37 = vector.multi_reduction <maximumf>, %36, %cst_19 [2] : vector<2x8x8xf32> to vector<2x8xf32>
    %38 = vector.shape_cast %37 : vector<2x8xf32> to vector<2x8x1xf32>
    %39 = vector.broadcast %38 : vector<2x8x1xf32> to vector<2x8x8xf32>
    %40 = arith.subf %36, %39 : vector<2x8x8xf32>
    %41 = math.exp %40 : vector<2x8x8xf32>
    %cst_20 = arith.constant dense<0.000000e+00> : vector<2x8xf32>
    %42 = vector.multi_reduction <add>, %41, %cst_20 [2] : vector<2x8x8xf32> to vector<2x8xf32>
    %43 = vector.shape_cast %42 : vector<2x8xf32> to vector<2x8x1xf32>
    %44 = tpu.reciprocal %43 {approx = true} : vector<2x8x1xf32> -> vector<2x8x1xf32>
    %45 = vector.broadcast %44 : vector<2x8x1xf32> to vector<2x8x8xf32>
    %46 = arith.mulf %41, %45 : vector<2x8x8xf32>
    %47 = arith.truncf %46 : vector<2x8x8xf32> to vector<2x8x8xbf16>
    "tpu.trace_start"() <{level = 10 : i32, message = "bqk,bkd->bqd"}> : () -> ()
    %cst_21 = arith.constant dense<0.000000e+00> : vector<2x8x8xf32>
    %48 = tpu.matmul %47, %35, %cst_21 {dimension_numbers = #tpu.dot_dimension_numbers<[2], [1], [1], [2], [0, 0, 0, 1, 1, 2], [0], [0]>} : vector<2x8x8xbf16>, vector<2x8x8xbf16>, vector<2x8x8xf32> -> vector<2x8x8xf32>
    "tpu.trace_stop"() : () -> ()
    %49 = vector.extract_strided_slice %12 {offsets = [0, 0, 16], sizes = [2, 8, 8], strides = [1, 1, 1]} : vector<2x8x32xbf16> to vector<2x8x8xbf16>
    %50 = vector.extract_strided_slice %14 {offsets = [0, 0, 16], sizes = [2, 8, 8], strides = [1, 1, 1]} : vector<2x8x32xbf16> to vector<2x8x8xbf16>
    %51 = vector.extract_strided_slice %16 {offsets = [0, 0, 16], sizes = [2, 8, 8], strides = [1, 1, 1]} : vector<2x8x32xbf16> to vector<2x8x8xbf16>
    "tpu.trace_start"() <{level = 10 : i32, message = "bqd,bkd->bqk"}> : () -> ()
    %cst_22 = arith.constant dense<0.000000e+00> : vector<2x8x8xf32>
    %52 = tpu.matmul %49, %50, %cst_22 {dimension_numbers = #tpu.dot_dimension_numbers<[2], [2], [1], [1], [0, 0, 0, 1, 1, 1], [0], [0]>} : vector<2x8x8xbf16>, vector<2x8x8xbf16>, vector<2x8x8xf32> -> vector<2x8x8xf32>
    "tpu.trace_stop"() : () -> ()
    %cst_23 = arith.constant dense<0xFF800000> : vector<2x8xf32>
    %53 = vector.multi_reduction <maximumf>, %52, %cst_23 [2] : vector<2x8x8xf32> to vector<2x8xf32>
    %54 = vector.shape_cast %53 : vector<2x8xf32> to vector<2x8x1xf32>
    %55 = vector.broadcast %54 : vector<2x8x1xf32> to vector<2x8x8xf32>
    %56 = arith.subf %52, %55 : vector<2x8x8xf32>
    %57 = math.exp %56 : vector<2x8x8xf32>
    %cst_24 = arith.constant dense<0.000000e+00> : vector<2x8xf32>
    %58 = vector.multi_reduction <add>, %57, %cst_24 [2] : vector<2x8x8xf32> to vector<2x8xf32>
    %59 = vector.shape_cast %58 : vector<2x8xf32> to vector<2x8x1xf32>
    %60 = tpu.reciprocal %59 {approx = true} : vector<2x8x1xf32> -> vector<2x8x1xf32>
    %61 = vector.broadcast %60 : vector<2x8x1xf32> to vector<2x8x8xf32>
    %62 = arith.mulf %57, %61 : vector<2x8x8xf32>
    %63 = arith.truncf %62 : vector<2x8x8xf32> to vector<2x8x8xbf16>
    "tpu.trace_start"() <{level = 10 : i32, message = "bqk,bkd->bqd"}> : () -> ()
    %cst_25 = arith.constant dense<0.000000e+00> : vector<2x8x8xf32>
    %64 = tpu.matmul %63, %51, %cst_25 {dimension_numbers = #tpu.dot_dimension_numbers<[2], [1], [1], [2], [0, 0, 0, 1, 1, 2], [0], [0]>} : vector<2x8x8xbf16>, vector<2x8x8xbf16>, vector<2x8x8xf32> -> vector<2x8x8xf32>
    "tpu.trace_stop"() : () -> ()
    %65 = vector.extract_strided_slice %12 {offsets = [0, 0, 24], sizes = [2, 8, 8], strides = [1, 1, 1]} : vector<2x8x32xbf16> to vector<2x8x8xbf16>
    %66 = vector.extract_strided_slice %14 {offsets = [0, 0, 24], sizes = [2, 8, 8], strides = [1, 1, 1]} : vector<2x8x32xbf16> to vector<2x8x8xbf16>
    %67 = vector.extract_strided_slice %16 {offsets = [0, 0, 24], sizes = [2, 8, 8], strides = [1, 1, 1]} : vector<2x8x32xbf16> to vector<2x8x8xbf16>
    "tpu.trace_start"() <{level = 10 : i32, message = "bqd,bkd->bqk"}> : () -> ()
    %cst_26 = arith.constant dense<0.000000e+00> : vector<2x8x8xf32>
    %68 = tpu.matmul %65, %66, %cst_26 {dimension_numbers = #tpu.dot_dimension_numbers<[2], [2], [1], [1], [0, 0, 0, 1, 1, 1], [0], [0]>} : vector<2x8x8xbf16>, vector<2x8x8xbf16>, vector<2x8x8xf32> -> vector<2x8x8xf32>
    "tpu.trace_stop"() : () -> ()
    %cst_27 = arith.constant dense<0xFF800000> : vector<2x8xf32>
    %69 = vector.multi_reduction <maximumf>, %68, %cst_27 [2] : vector<2x8x8xf32> to vector<2x8xf32>
    %70 = vector.shape_cast %69 : vector<2x8xf32> to vector<2x8x1xf32>
    %71 = vector.broadcast %70 : vector<2x8x1xf32> to vector<2x8x8xf32>
    %72 = arith.subf %68, %71 : vector<2x8x8xf32>
    %73 = math.exp %72 : vector<2x8x8xf32>
    %cst_28 = arith.constant dense<0.000000e+00> : vector<2x8xf32>
    %74 = vector.multi_reduction <add>, %73, %cst_28 [2] : vector<2x8x8xf32> to vector<2x8xf32>
    %75 = vector.shape_cast %74 : vector<2x8xf32> to vector<2x8x1xf32>
    %76 = tpu.reciprocal %75 {approx = true} : vector<2x8x1xf32> -> vector<2x8x1xf32>
    %77 = vector.broadcast %76 : vector<2x8x1xf32> to vector<2x8x8xf32>
    %78 = arith.mulf %73, %77 : vector<2x8x8xf32>
    %79 = arith.truncf %78 : vector<2x8x8xf32> to vector<2x8x8xbf16>
    "tpu.trace_start"() <{level = 10 : i32, message = "bqk,bkd->bqd"}> : () -> ()
    %cst_29 = arith.constant dense<0.000000e+00> : vector<2x8x8xf32>
    %80 = tpu.matmul %79, %67, %cst_29 {dimension_numbers = #tpu.dot_dimension_numbers<[2], [1], [1], [2], [0, 0, 0, 1, 1, 2], [0], [0]>} : vector<2x8x8xbf16>, vector<2x8x8xbf16>, vector<2x8x8xf32> -> vector<2x8x8xf32>
    "tpu.trace_stop"() : () -> ()
    %81 = tpu.concatenate %32, %48, %64, %80 in 2 : vector<2x8x8xf32>, vector<2x8x8xf32>, vector<2x8x8xf32>, vector<2x8x8xf32> -> vector<2x8x32xf32>
    %82 = vector.shape_cast %81 : vector<2x8x32xf32> to vector<16x32xf32>
    %83 = arith.truncf %82 : vector<16x32xf32> to vector<16x32xbf16>
    %c0_30 = arith.constant 0 : index
    %c0_31 = arith.constant 0 : index
    %84 = vector.load %arg7[%c0_30, %c0_31] : memref<32x32xbf16, #tpu.memory_space<vmem>>, vector<32x32xbf16>
    %cst_32 = arith.constant dense<0.000000e+00> : vector<16x32xf32>
    %85 = tpu.matmul %83, %84, %cst_32 {dimension_numbers = #tpu.dot_dimension_numbers<[1], [1], [0], [0], [0, 0, 1, 0], [], []>} : vector<16x32xbf16>, vector<32x32xbf16>, vector<16x32xf32> -> vector<16x32xf32>
    %c0_33 = arith.constant 0 : index
    %c0_34 = arith.constant 0 : index
    %86 = vector.load %arg8[%c0_33, %c0_34] : memref<16x32xf32, #tpu.memory_space<vmem>>, vector<16x32xf32>
    tpu.vector_store %arg8[%c0_33, %c0_34], %85 {strides = array<i32>} : memref<16x32xf32, #tpu.memory_space<vmem>>, vector<16x32xf32>,
    return
  }
  func.func @transform_0(%arg0: i32) -> (i32, i32) {
    %c0_i32 = arith.constant 0 : i32
    %c0_i32_0 = arith.constant 0 : i32
    return %arg0, %c0_i32 : i32, i32
  }
  func.func @transform_1(%arg0: i32) -> (i32, i32) {
    %c0_i32 = arith.constant 0 : i32
    %c0_i32_0 = arith.constant 0 : i32
    return %arg0, %c0_i32 : i32, i32
  }
  func.func @transform_2(%arg0: i32) -> (i32, i32) {
    %c0_i32 = arith.constant 0 : i32
    %c0_i32_0 = arith.constant 0 : i32
    return %arg0, %c0_i32 : i32, i32
  }
  func.func @transform_3(%arg0: i32) -> (i32, i32) {
    %c0_i32 = arith.constant 0 : i32
    %c0_i32_0 = arith.constant 0 : i32
    %c0_i32_1 = arith.constant 0 : i32
    return %c0_i32, %c0_i32_0 : i32, i32
  }
  func.func @transform_4(%arg0: i32) -> (i32, i32) {
    %c0_i32 = arith.constant 0 : i32
    %c0_i32_0 = arith.constant 0 : i32
    %c0_i32_1 = arith.constant 0 : i32
    return %c0_i32, %c0_i32_0 : i32, i32
  }
  func.func @transform_5(%arg0: i32) -> (i32, i32) {
    %c0_i32 = arith.constant 0 : i32
    %c0_i32_0 = arith.constant 0 : i32
    %c0_i32_1 = arith.constant 0 : i32
    return %c0_i32, %c0_i32_0 : i32, i32
  }
  func.func @transform_6(%arg0: i32) -> (i32, i32) {
    %c0_i32 = arith.constant 0 : i32
    %c0_i32_0 = arith.constant 0 : i32
    %c0_i32_1 = arith.constant 0 : i32
    return %c0_i32, %c0_i32_0 : i32, i32
  }
  func.func @transform_7(%arg0: i32) -> (i32, i32) {
    %c0_i32 = arith.constant 0 : i32
    %c0_i32_0 = arith.constant 0 : i32
    return %arg0, %c0_i32 : i32, i32
  }
}

</mosaic_0001>

<llo_original>
// kernel: tpu_custom_call.1
$region0: #{tpu_custom_call.1}
  #allocation0 [shape = 'u32[]', space=smem, size = 0x4, offset = 0x4, fixed_abs, tag = 'smem constant byte address 0x4 - core index']
  #allocation1 [shape = 'u32[144,128]{1,0:T(1,128)}', space=vmem, size = 0x12000, scoped, tag = 'internal scratch']
  %s0 = inlined_call_operand.hbm [shape: bf16[16,32], index: 0, kind: input, shape index: {}]
  %s1 = inlined_call_operand.hbm [shape: bf16[16,32], index: 1, kind: input, shape index: {}]
  %s2 = inlined_call_operand.hbm [shape: bf16[16,32], index: 2, kind: input, shape index: {}]
  %s3 = inlined_call_operand.hbm [shape: bf16[32,32], index: 3, kind: input, shape index: {}]
  %s4 = inlined_call_operand.hbm [shape: bf16[32,32], index: 4, kind: input, shape index: {}]
  %s5 = inlined_call_operand.hbm [shape: bf16[32,32], index: 5, kind: input, shape index: {}]
  %s6 = inlined_call_operand.hbm [shape: bf16[32,32], index: 6, kind: input, shape index: {}]
  %s7 = inlined_call_operand.hbm [shape: f32[16,32], index: 7, kind: output, shape index: {}]
  %s8 = sld [smem:[#allocation0]]
  $region66: #{tpu_custom_call.1} parent=0
    _
  %s10 = ssub.s32 1, %s8
  %s11 = scalar_select 0, %s10, %s8
  $region1: #{tpu_custom_call.1} parent=0
    #allocation2 [shape = 'u8[4096]{0}', space=vmem, size = 0x1000, scoped, tag = 'input window, operand 0, single buffered']
    #allocation3 [shape = 's32[1]{0}', space=sflag, size = 0x4, scoped, tag = 'scoped memory for tpu_custom_call.1']
    #allocation4 [shape = 's32[1]{0}', space=sflag, size = 0x4, scoped, tag = 'scoped memory for tpu_custom_call.1']
    #allocation5 [shape = 'u8[4096]{0}', space=vmem, size = 0x1000, scoped, tag = 'input window, operand 1, single buffered']
    #allocation6 [shape = 's32[1]{0}', space=sflag, size = 0x4, scoped, tag = 'scoped memory for tpu_custom_call.1']
    #allocation7 [shape = 'u8[4096]{0}', space=vmem, size = 0x1000, scoped, tag = 'input window, operand 2, single buffered']
    #allocation8 [shape = 'u8[8192]{0}', space=vmem, size = 0x2000, scoped, tag = 'input window, operand 3, single buffered']
    #allocation9 [shape = 's32[1]{0}', space=sflag, size = 0x4, scoped, tag = 'scoped memory for tpu_custom_call.1']
    #allocation10 [shape = 'u8[8192]{0}', space=vmem, size = 0x2000, scoped, tag = 'input window, operand 4, single buffered']
    #allocation11 [shape = 'u8[8192]{0}', space=vmem, size = 0x2000, scoped, tag = 'input window, operand 5, single buffered']
    #allocation12 [shape = 's32[1]{0}', space=sflag, size = 0x4, scoped, tag = 'scoped memory for tpu_custom_call.1']
    #allocation13 [shape = 'u8[8192]{0}', space=vmem, size = 0x2000, scoped, tag = 'input window, operand 6, single buffered']
    #allocation14 [shape = 'u8[8192]{0}', space=vmem, size = 0x2000, scoped, tag = 'output window, operand 0, single buffered']
    %12 = vsyncpa [#allocation3], 0
    %13 = vsyncpa [#allocation6], 0
    %14 = vsyncpa [#allocation9], 0
    %15 = vsyncpa [#allocation12], 0
    %16 = vsyncpa [#allocation4], 0
    // Predicated region
    $region2: #{tpu_custom_call.1} parent=1 // pred_check
      _
    $region3: #{tpu_custom_call.1} parent=1 // pred_check_branch
      %18 = sbr.rel (0) target = $region5
    $region4: #{tpu_custom_call.1} parent=1 // pred_region
      %s20 = ssub.s32 128, 128
      %21 = vsyncadd [#allocation3], %s20
      %s22 = sshll.u32 [#allocation2], 4
      %s23 = int_to_ptr.vmem [resolvable:$true] %s22
      %28 = dma.hbm_to_vmem [thread:$0]  %s0, 128, %s23, [#allocation3], 64, 64, 4
    $region5: #{tpu_custom_call.1} parent=1 // pred_fallthru
      _
    // Predicated region
    $region6: #{tpu_custom_call.1} parent=1 // pred_check
      _
    $region7: #{tpu_custom_call.1} parent=1 // pred_check_branch
      %30 = sbr.rel (0) target = $region9
    $region8: #{tpu_custom_call.1} parent=1 // pred_region
      %s32 = ssub.s32 128, 128
      %33 = vsyncadd [#allocation6], %s32
      %s34 = sshll.u32 [#allocation5], 4
      %s35 = int_to_ptr.vmem [resolvable:$true] %s34
      %40 = dma.hbm_to_vmem [thread:$0]  %s1, 128, %s35, [#allocation6], 64, 64, 4
    $region9: #{tpu_custom_call.1} parent=1 // pred_fallthru
      _
    // Predicated region
    $region10: #{tpu_custom_call.1} parent=1 // pred_check
      _
    $region11: #{tpu_custom_call.1} parent=1 // pred_check_branch
      %42 = sbr.rel (0) target = $region13
    $region12: #{tpu_custom_call.1} parent=1 // pred_region
      %s44 = ssub.s32 128, 128
      %45 = vsyncadd [#allocation6], %s44
      %s46 = sshll.u32 [#allocation7], 4
      %s47 = int_to_ptr.vmem [resolvable:$true] %s46
      %52 = dma.hbm_to_vmem [thread:$0]  %s2, 128, %s47, [#allocation6], 64, 64, 4
    $region13: #{tpu_custom_call.1} parent=1 // pred_fallthru
      _
    // Predicated region
    $region14: #{tpu_custom_call.1} parent=1 // pred_check
      _
    $region15: #{tpu_custom_call.1} parent=1 // pred_check_branch
      %54 = sbr.rel (0) target = $region17
    $region16: #{tpu_custom_call.1} parent=1 // pred_region
      %s56 = ssub.s32 256, 256
      %57 = vsyncadd [#allocation9], %s56
      %s58 = sshll.u32 [#allocation8], 4
      %s59 = int_to_ptr.vmem [resolvable:$true] %s58
      %64 = dma.hbm_to_vmem [thread:$0]  %s3, 256, %s59, [#allocation9], 64, 64, 4
    $region17: #{tpu_custom_call.1} parent=1 // pred_fallthru
      _
    // Predicated region
    $region18: #{tpu_custom_call.1} parent=1 // pred_check
      _
    $region19: #{tpu_custom_call.1} parent=1 // pred_check_branch
      %66 = sbr.rel (0) target = $region21
    $region20: #{tpu_custom_call.1} parent=1 // pred_region
      %s68 = ssub.s32 256, 256
      %69 = vsyncadd [#allocation9], %s68
      %s70 = sshll.u32 [#allocation10], 4
      %s71 = int_to_ptr.vmem [resolvable:$true] %s70
      %76 = dma.hbm_to_vmem [thread:$0]  %s4, 256, %s71, [#allocation9], 64, 64, 4
    $region21: #{tpu_custom_call.1} parent=1 // pred_fallthru
      _
    // Predicated region
    $region22: #{tpu_custom_call.1} parent=1 // pred_check
      _
    $region23: #{tpu_custom_call.1} parent=1 // pred_check_branch
      %78 = sbr.rel (0) target = $region25
    $region24: #{tpu_custom_call.1} parent=1 // pred_region
      %s80 = ssub.s32 256, 256
      %81 = vsyncadd [#allocation12], %s80
      %s82 = sshll.u32 [#allocation11], 4
      %s83 = int_to_ptr.vmem [resolvable:$true] %s82
      %88 = dma.hbm_to_vmem [thread:$0]  %s5, 256, %s83, [#allocation12], 64, 64, 4
    $region25: #{tpu_custom_call.1} parent=1 // pred_fallthru
      _
    // Predicated region
    $region26: #{tpu_custom_call.1} parent=1 // pred_check
      _
    $region27: #{tpu_custom_call.1} parent=1 // pred_check_branch
      %90 = sbr.rel (0) target = $region29
    $region28: #{tpu_custom_call.1} parent=1 // pred_region
      %s92 = ssub.s32 256, 256
      %93 = vsyncadd [#allocation12], %s92
      %s94 = sshll.u32 [#allocation13], 4
      %s95 = int_to_ptr.vmem [resolvable:$true] %s94
      %100 = dma.hbm_to_vmem [thread:$0]  %s6, 256, %s95, [#allocation12], 64, 64, 4
    $region29: #{tpu_custom_call.1} parent=1 // pred_fallthru
      _
    // Predicated region
    $region30: #{tpu_custom_call.1} parent=1 // pred_check
      _
    $region31: #{tpu_custom_call.1} parent=1 // pred_check_branch
      %102 = sbr.rel (0) target = $region33
    $region32: #{tpu_custom_call.1} parent=1 // pred_region
      %103 = dma.done [#allocation3], 128
    $region33: #{tpu_custom_call.1} parent=1 // pred_fallthru
      _
    // Predicated region
    $region34: #{tpu_custom_call.1} parent=1 // pred_check
      _
    $region35: #{tpu_custom_call.1} parent=1 // pred_check_branch
      %105 = sbr.rel (0) target = $region37
    $region36: #{tpu_custom_call.1} parent=1 // pred_region
      %106 = dma.done [#allocation6], 128
    $region37: #{tpu_custom_call.1} parent=1 // pred_fallthru
      _
    // Predicated region
    $region38: #{tpu_custom_call.1} parent=1 // pred_check
      _
    $region39: #{tpu_custom_call.1} parent=1 // pred_check_branch
      %108 = sbr.rel (0) target = $region41
    $region40: #{tpu_custom_call.1} parent=1 // pred_region
      %109 = dma.done [#allocation6], 128
    $region41: #{tpu_custom_call.1} parent=1 // pred_fallthru
      _
    // Predicated region
    $region42: #{tpu_custom_call.1} parent=1 // pred_check
      _
    $region43: #{tpu_custom_call.1} parent=1 // pred_check_branch
      %111 = sbr.rel (0) target = $region45
    $region44: #{tpu_custom_call.1} parent=1 // pred_region
      %112 = dma.done [#allocation9], 256
    $region45: #{tpu_custom_call.1} parent=1 // pred_fallthru
      _
    // Predicated region
    $region46: #{tpu_custom_call.1} parent=1 // pred_check
      _
    $region47: #{tpu_custom_call.1} parent=1 // pred_check_branch
      %114 = sbr.rel (0) target = $region49
    $region48: #{tpu_custom_call.1} parent=1 // pred_region
      %115 = dma.done [#allocation9], 256
    $region49: #{tpu_custom_call.1} parent=1 // pred_fallthru
      _
    // Predicated region
    $region50: #{tpu_custom_call.1} parent=1 // pred_check
      _
    $region51: #{tpu_custom_call.1} parent=1 // pred_check_branch
      %117 = sbr.rel (0) target = $region53
    $region52: #{tpu_custom_call.1} parent=1 // pred_region
      %118 = dma.done [#allocation12], 256
    $region53: #{tpu_custom_call.1} parent=1 // pred_fallthru
      _
    // Predicated region
    $region54: #{tpu_custom_call.1} parent=1 // pred_check
      _
    $region55: #{tpu_custom_call.1} parent=1 // pred_check_branch
      %120 = sbr.rel (0) target = $region57
    $region56: #{tpu_custom_call.1} parent=1 // pred_region
      %121 = dma.done [#allocation12], 256
    $region57: #{tpu_custom_call.1} parent=1 // pred_fallthru
      _
    %v123 = vld [vmem:[#allocation2] sm:$0xf]
    %v124 = vld [vmem:[#allocation2 + $0x4] sm:$0xf]
    %v125 = vld [vmem:[#allocation8] sm:$0xf]
    %v126 = vld [vmem:[#allocation8 + $0x4] sm:$0xf]
    %v127 = vld [vmem:[#allocation8 + $0x8] sm:$0xf]
    %v128 = vld [vmem:[#allocation8 + $0xc] sm:$0xf]
    %v131 = vunpack.c.l.b16 %v123
    %v132 = vunpack.c.l.b16 %v124
    %v133 = vpack.c.b16 %v132, %v131
    %v138 = vunpack.c.l.b16 %v125
    %v139 = vunpack.c.l.b16 %v126
    %v140 = vunpack.c.l.b16 %v127
    %v141 = vunpack.c.l.b16 %v128
    %v142 = vpack.c.b16 %v139, %v138
    %v143 = vpack.c.b16 %v141, %v140
    %vm144 = vcmask 261120
    %v146 = vsel %vm144, %v133, 0
    %v149 = vsel %vm144, %v142, 0
    %v152 = vsel %vm144, %v143, 0
    %154 = vmatprep.subr.bf16.mxu0 0
    %155 = vmatpush1.bf16.xpose.msra.mxu0 0
    %156 = vmatprep.subr.bf16.mxu0 0
    %157 = vmatpush1.bf16.xpose.msra.mxu0 0
    %158 = vmatprep.subr.bf16.mxu0 0
    %159 = vmatpush1.bf16.xpose.msra.mxu0 0
    %160 = vmatprep.subr.bf16.mxu0 0
    %161 = vmatpush1.bf16.xpose.msra.mxu0 0
    %162 = vmatprep.subr.bf16.mxu0 0
    %163 = vmatpush1.bf16.xpose.msra.mxu0 0
    %164 = vmatprep.subr.bf16.mxu0 0
    %165 = vmatpush1.bf16.xpose.msra.mxu0 0
    %166 = vmatprep.subr.bf16.mxu0 0
    %167 = vmatpush1.bf16.xpose.msra.mxu0 %v152
    %168 = vmatprep.subr.bf16.mxu0 0
    %169 = vmatpush1.bf16.xpose.msra.mxu0 %v149
    %170 = vmatprep.subr.bf16.mxu0 0
    %171 = vmatpush2.bf16.xpose.msra.mxu0 0
    %172 = vmatprep.subr.bf16.mxu0 0
    %173 = vmatpush2.bf16.xpose.msra.mxu0 0
    %174 = vmatprep.subr.bf16.mxu0 0
    %175 = vmatpush2.bf16.xpose.msra.mxu0 0
    %176 = vmatprep.subr.bf16.mxu0 0
    %177 = vmatpush2.bf16.xpose.msra.mxu0 0
    %178 = vmatprep.subr.bf16.mxu0 0
    %179 = vmatpush2.bf16.xpose.msra.mxu0 0
    %180 = vmatprep.subr.bf16.mxu0 0
    %181 = vmatpush2.bf16.xpose.msra.mxu0 0
    %182 = vmatprep.subr.bf16.mxu0 0
    %183 = vmatpush2.bf16.xpose.msra.mxu0 0
    %184 = vmatprep.subr.bf16.mxu0 0
    %185 = vmatpush2.bf16.xpose.msra.mxu0 0
    %186 = vmatprep.mubr.bf16.mxu0 0
    %187 = vmatmul.mubr.bf16.gmra.mxu0 %v146
    %v188 = vpop.f32.mrf.mxu0
    %v189 = vadd.f32 0.0, %v188
    %v190 = vpop.f32.mrf.mxu0
    %v191 = vpop.f32.mrf.mxu0
    %v192 = vadd.f32 0.0, %v191
    %v193 = vpop.f32.mrf.mxu0
    %194 = vdwg.mxu0
    %v195 = vld [vmem:[#allocation5] sm:$0xf]
    %v196 = vld [vmem:[#allocation5 + $0x4] sm:$0xf]
    %v197 = vld [vmem:[#allocation10] sm:$0xf]
    %v198 = vld [vmem:[#allocation10 + $0x4] sm:$0xf]
    %v199 = vld [vmem:[#allocation10 + $0x8] sm:$0xf]
    %v200 = vld [vmem:[#allocation10 + $0xc] sm:$0xf]
    %v203 = vunpack.c.l.b16 %v195
    %v204 = vunpack.c.l.b16 %v196
    %v205 = vpack.c.b16 %v204, %v203
    %v210 = vunpack.c.l.b16 %v197
    %v211 = vunpack.c.l.b16 %v198
    %v212 = vunpack.c.l.b16 %v199
    %v213 = vunpack.c.l.b16 %v200
    %v214 = vpack.c.b16 %v211, %v210
    %v215 = vpack.c.b16 %v213, %v212
    %v217 = vsel %vm144, %v205, 0
    %v220 = vsel %vm144, %v214, 0
    %v223 = vsel %vm144, %v215, 0
    %225 = vmatprep.subr.bf16.mxu0 0
    %226 = vmatpush1.bf16.xpose.msra.mxu0 0
    %227 = vmatprep.subr.bf16.mxu0 0
    %228 = vmatpush1.bf16.xpose.msra.mxu0 0
    %229 = vmatprep.subr.bf16.mxu0 0
    %230 = vmatpush1.bf16.xpose.msra.mxu0 0
    %231 = vmatprep.subr.bf16.mxu0 0
    %232 = vmatpush1.bf16.xpose.msra.mxu0 0
    %233 = vmatprep.subr.bf16.mxu0 0
    %234 = vmatpush1.bf16.xpose.msra.mxu0 0
    %235 = vmatprep.subr.bf16.mxu0 0
    %236 = vmatpush1.bf16.xpose.msra.mxu0 0
    %237 = vmatprep.subr.bf16.mxu0 0
    %238 = vmatpush1.bf16.xpose.msra.mxu0 %v223
    %239 = vmatprep.subr.bf16.mxu0 0
    %240 = vmatpush1.bf16.xpose.msra.mxu0 %v220
    %241 = vmatprep.subr.bf16.mxu0 0
    %242 = vmatpush2.bf16.xpose.msra.mxu0 0
    %243 = vmatprep.subr.bf16.mxu0 0
    %244 = vmatpush2.bf16.xpose.msra.mxu0 0
    %245 = vmatprep.subr.bf16.mxu0 0
    %246 = vmatpush2.bf16.xpose.msra.mxu0 0
    %247 = vmatprep.subr.bf16.mxu0 0
    %248 = vmatpush2.bf16.xpose.msra.mxu0 0
    %249 = vmatprep.subr.bf16.mxu0 0
    %250 = vmatpush2.bf16.xpose.msra.mxu0 0
    %251 = vmatprep.subr.bf16.mxu0 0
    %252 = vmatpush2.bf16.xpose.msra.mxu0 0
    %253 = vmatprep.subr.bf16.mxu0 0
    %254 = vmatpush2.bf16.xpose.msra.mxu0 0
    %255 = vmatprep.subr.bf16.mxu0 0
    %256 = vmatpush2.bf16.xpose.msra.mxu0 0
    %257 = vmatprep.mubr.bf16.mxu0 0
    %258 = vmatmul.mubr.bf16.gmra.mxu0 %v217
    %v259 = vpop.f32.mrf.mxu0
    %v260 = vadd.f32 0.0, %v259
    %v261 = vpop.f32.mrf.mxu0
    %v262 = vpop.f32.mrf.mxu0
    %v263 = vadd.f32 0.0, %v262
    %v264 = vpop.f32.mrf.mxu0
    %265 = vdwg.mxu0
    %v266 = vld [vmem:[#allocation7] sm:$0xf]
    %v267 = vld [vmem:[#allocation7 + $0x4] sm:$0xf]
    %v268 = vld [vmem:[#allocation11] sm:$0xf]
    %v269 = vld [vmem:[#allocation11 + $0x4] sm:$0xf]
    %v270 = vld [vmem:[#allocation11 + $0x8] sm:$0xf]
    %v271 = vld [vmem:[#allocation11 + $0xc] sm:$0xf]
    %v274 = vunpack.c.l.b16 %v266
    %v275 = vunpack.c.l.b16 %v267
    %v276 = vpack.c.b16 %v275, %v274
    %v281 = vunpack.c.l.b16 %v268
    %v282 = vunpack.c.l.b16 %v269
    %v283 = vunpack.c.l.b16 %v270
    %v284 = vunpack.c.l.b16 %v271
    %v285 = vpack.c.b16 %v282, %v281
    %v286 = vpack.c.b16 %v284, %v283
    %v288 = vsel %vm144, %v276, 0
    %v291 = vsel %vm144, %v285, 0
    %v294 = vsel %vm144, %v286, 0
    %296 = vmatprep.subr.bf16.mxu0 0
    %297 = vmatpush1.bf16.xpose.msra.mxu0 0
    %298 = vmatprep.subr.bf16.mxu0 0
    %299 = vmatpush1.bf16.xpose.msra.mxu0 0
    %300 = vmatprep.subr.bf16.mxu0 0
    %301 = vmatpush1.bf16.xpose.msra.mxu0 0
    %302 = vmatprep.subr.bf16.mxu0 0
    %303 = vmatpush1.bf16.xpose.msra.mxu0 0
    %304 = vmatprep.subr.bf16.mxu0 0
    %305 = vmatpush1.bf16.xpose.msra.mxu0 0
    %306 = vmatprep.subr.bf16.mxu0 0
    %307 = vmatpush1.bf16.xpose.msra.mxu0 0
    %308 = vmatprep.subr.bf16.mxu0 0
    %309 = vmatpush1.bf16.xpose.msra.mxu0 %v294
    %310 = vmatprep.subr.bf16.mxu0 0
    %311 = vmatpush1.bf16.xpose.msra.mxu0 %v291
    %312 = vmatprep.subr.bf16.mxu0 0
    %313 = vmatpush2.bf16.xpose.msra.mxu0 0
    %314 = vmatprep.subr.bf16.mxu0 0
    %315 = vmatpush2.bf16.xpose.msra.mxu0 0
    %316 = vmatprep.subr.bf16.mxu0 0
    %317 = vmatpush2.bf16.xpose.msra.mxu0 0
    %318 = vmatprep.subr.bf16.mxu0 0
    %319 = vmatpush2.bf16.xpose.msra.mxu0 0
    %320 = vmatprep.subr.bf16.mxu0 0
    %321 = vmatpush2.bf16.xpose.msra.mxu0 0
    %322 = vmatprep.subr.bf16.mxu0 0
    %323 = vmatpush2.bf16.xpose.msra.mxu0 0
    %324 = vmatprep.subr.bf16.mxu0 0
    %325 = vmatpush2.bf16.xpose.msra.mxu0 0
    %326 = vmatprep.subr.bf16.mxu0 0
    %327 = vmatpush2.bf16.xpose.msra.mxu0 0
    %328 = vmatprep.mubr.bf16.mxu0 0
    %329 = vmatmul.mubr.bf16.gmra.mxu0 %v288
    %v330 = vpop.f32.mrf.mxu0
    %v331 = vadd.f32 0.0, %v330
    %v332 = vpop.f32.mrf.mxu0
    %v333 = vpop.f32.mrf.mxu0
    %v334 = vadd.f32 0.0, %v333
    %v335 = vpop.f32.mrf.mxu0
    %336 = vdwg.mxu0
    %v337 = vmul.f32 %v189, 0.35355338
    %v338 = vmul.f32 %v192, 0.35355338
    %v339 = vpack.c.bf16 %v337, %v337
    %v340 = vpack.c.bf16 %v338, %v338
    %v341 = vpack.c.bf16 %v260, %v260
    %v342 = vpack.c.bf16 %v263, %v263
    %v343 = vpack.c.bf16 %v331, %v331
    %v344 = vpack.c.bf16 %v334, %v334
    %vm345 = vcmask 64512
    %v347 = vsel %vm345, %v339, 0
    %v350 = vsel %vm345, %v341, 0
    %352 = vmatprep.subr.bf16.mxu0 0
    %353 = vmatpush1.bf16.xpose.msra.mxu0 0
    %354 = vmatprep.subr.bf16.mxu0 0
    %355 = vmatpush1.bf16.xpose.msra.mxu0 0
    %356 = vmatprep.subr.bf16.mxu0 0
    %357 = vmatpush1.bf16.xpose.msra.mxu0 0
    %358 = vmatprep.subr.bf16.mxu0 0
    %359 = vmatpush1.bf16.xpose.msra.mxu0 0
    %360 = vmatprep.subr.bf16.mxu0 0
    %361 = vmatpush1.bf16.xpose.msra.mxu0 0
    %362 = vmatprep.subr.bf16.mxu0 0
    %363 = vmatpush1.bf16.xpose.msra.mxu0 0
    %364 = vmatprep.subr.bf16.mxu0 0
    %365 = vmatpush1.bf16.xpose.msra.mxu0 0
    %366 = vmatprep.subr.bf16.mxu0 0
    %367 = vmatpush1.bf16.xpose.msra.mxu0 %v350
    %368 = vmatprep.subr.bf16.mxu0 0
    %369 = vmatpush2.bf16.xpose.msra.mxu0 0
    %370 = vmatprep.subr.bf16.mxu0 0
    %371 = vmatpush2.bf16.xpose.msra.mxu0 0
    %372 = vmatprep.subr.bf16.mxu0 0
    %373 = vmatpush2.bf16.xpose.msra.mxu0 0
    %374 = vmatprep.subr.bf16.mxu0 0
    %375 = vmatpush2.bf16.xpose.msra.mxu0 0
    %376 = vmatprep.subr.bf16.mxu0 0
    %377 = vmatpush2.bf16.xpose.msra.mxu0 0
    %378 = vmatprep.subr.bf16.mxu0 0
    %379 = vmatpush2.bf16.xpose.msra.mxu0 0
    %380 = vmatprep.subr.bf16.mxu0 0
    %381 = vmatpush2.bf16.xpose.msra.mxu0 0
    %382 = vmatprep.subr.bf16.mxu0 0
    %383 = vmatpush2.bf16.xpose.msra.mxu0 0
    %384 = vmatprep.mubr.bf16.mxu0 0
    %385 = vmatmul.mubr.bf16.gmra.mxu0 %v347
    %v386 = vpop.f32.mrf.mxu0
    %v387 = vadd.f32 0.0, %v386
    %v388 = vpop.f32.mrf.mxu0
    %v389 = vpop.f32.mrf.mxu0
    %v390 = vpop.f32.mrf.mxu0
    %391 = vdwg.mxu0
    %v393 = vsel %vm345, %v340, 0
    %v396 = vsel %vm345, %v342, 0
    %398 = vmatprep.subr.bf16.mxu0 0
    %399 = vmatpush1.bf16.xpose.msra.mxu0 0
    %400 = vmatprep.subr.bf16.mxu0 0
    %401 = vmatpush1.bf16.xpose.msra.mxu0 0
    %402 = vmatprep.subr.bf16.mxu0 0
    %403 = vmatpush1.bf16.xpose.msra.mxu0 0
    %404 = vmatprep.subr.bf16.mxu0 0
    %405 = vmatpush1.bf16.xpose.msra.mxu0 0
    %406 = vmatprep.subr.bf16.mxu0 0
    %407 = vmatpush1.bf16.xpose.msra.mxu0 0
    %408 = vmatprep.subr.bf16.mxu0 0
    %409 = vmatpush1.bf16.xpose.msra.mxu0 0
    %410 = vmatprep.subr.bf16.mxu0 0
    %411 = vmatpush1.bf16.xpose.msra.mxu0 0
    %412 = vmatprep.subr.bf16.mxu0 0
    %413 = vmatpush1.bf16.xpose.msra.mxu0 %v396
    %414 = vmatprep.subr.bf16.mxu0 0
    %415 = vmatpush2.bf16.xpose.msra.mxu0 0
    %416 = vmatprep.subr.bf16.mxu0 0
    %417 = vmatpush2.bf16.xpose.msra.mxu0 0
    %418 = vmatprep.subr.bf16.mxu0 0
    %419 = vmatpush2.bf16.xpose.msra.mxu0 0
    %420 = vmatprep.subr.bf16.mxu0 0
    %421 = vmatpush2.bf16.xpose.msra.mxu0 0
    %422 = vmatprep.subr.bf16.mxu0 0
    %423 = vmatpush2.bf16.xpose.msra.mxu0 0
    %424 = vmatprep.subr.bf16.mxu0 0
    %425 = vmatpush2.bf16.xpose.msra.mxu0 0
    %426 = vmatprep.subr.bf16.mxu0 0
    %427 = vmatpush2.bf16.xpose.msra.mxu0 0
    %428 = vmatprep.subr.bf16.mxu0 0
    %429 = vmatpush2.bf16.xpose.msra.mxu0 0
    %430 = vmatprep.mubr.bf16.mxu0 0
    %431 = vmatmul.mubr.bf16.gmra.mxu0 %v393
    %v432 = vpop.f32.mrf.mxu0
    %v433 = vadd.f32 0.0, %v432
    %v434 = vpop.f32.mrf.mxu0
    %v435 = vpop.f32.mrf.mxu0
    %v436 = vpop.f32.mrf.mxu0
    %437 = vdwg.mxu0
    %v438 = vsel %vm345, %v387, -inf
    %439 = vmax.xlane.f32.xlu0 %v438
    %v440 = vpop.xlane.xlu0 %439
    %v441 = vsel %vm345, %v433, -inf
    %442 = vmax.xlane.f32.xlu0 %v441
    %v443 = vpop.xlane.xlu0 %442
    %v444 = vsub.f32 %v387, %v440
    %v445 = vsub.f32 %v433, %v443
    %v446 = vmul.f32 %v444, 1.442695
    %v447 = vpow.pop %v446
    %v448 = vmul.f32 %v445, 1.442695
    %v449 = vpow.pop %v448
    %v450 = vsel %vm345, %v447, 0.0
    %451 = vadd.xlane.f32.xlu0 %v450
    %v452 = vpop.xlane.xlu0 %451
    %v453 = vsel %vm345, %v449, 0.0
    %454 = vadd.xlane.f32.xlu0 %v453
    %v455 = vpop.xlane.xlu0 %454
    %v456 = vrcp.pop %v452
    %v457 = vrcp.pop %v455
    %v458 = vmul.f32 %v447, %v456
    %v459 = vmul.f32 %v449, %v457
    %v460 = vpack.c.bf16 %v458, %v458
    %v461 = vpack.c.bf16 %v459, %v459
    %v463 = vsel %vm345, %v460, 0
    %vm465 = vcmask 1043456
    %v467 = vsel %vm465, %v343, 0
    %469 = vmatprep.subr.bf16.mxu0 0
    %470 = vmatpush1.bf16.msra.mxu0 0
    %471 = vmatprep.subr.bf16.mxu0 0
    %472 = vmatpush1.bf16.msra.mxu0 0
    %473 = vmatprep.subr.bf16.mxu0 0
    %474 = vmatpush1.bf16.msra.mxu0 0
    %475 = vmatprep.subr.bf16.mxu0 0
    %476 = vmatpush1.bf16.msra.mxu0 0
    %477 = vmatprep.subr.bf16.mxu0 0
    %478 = vmatpush1.bf16.msra.mxu0 0
    %479 = vmatprep.subr.bf16.mxu0 0
    %480 = vmatpush1.bf16.msra.mxu0 0
    %481 = vmatprep.subr.bf16.mxu0 0
    %482 = vmatpush1.bf16.msra.mxu0 0
    %483 = vmatprep.subr.bf16.mxu0 0
    %484 = vmatpush1.bf16.msra.mxu0 %v467
    %485 = vmatprep.subr.bf16.mxu0 0
    %486 = vmatpush2.bf16.msra.mxu0 0
    %487 = vmatprep.subr.bf16.mxu0 0
    %488 = vmatpush2.bf16.msra.mxu0 0
    %489 = vmatprep.subr.bf16.mxu0 0
    %490 = vmatpush2.bf16.msra.mxu0 0
    %491 = vmatprep.subr.bf16.mxu0 0
    %492 = vmatpush2.bf16.msra.mxu0 0
    %493 = vmatprep.subr.bf16.mxu0 0
    %494 = vmatpush2.bf16.msra.mxu0 0
    %495 = vmatprep.subr.bf16.mxu0 0
    %496 = vmatpush2.bf16.msra.mxu0 0
    %497 = vmatprep.subr.bf16.mxu0 0
    %498 = vmatpush2.bf16.msra.mxu0 0
    %499 = vmatprep.subr.bf16.mxu0 0
    %500 = vmatpush2.bf16.msra.mxu0 0
    %501 = vmatprep.mubr.bf16.mxu0 0
    %502 = vmatmul.mubr.bf16.gmra.mxu0 %v463
    %v503 = vpop.f32.mrf.mxu0
    %v504 = vadd.f32 0.0, %v503
    %v505 = vpop.f32.mrf.mxu0
    %v506 = vpop.f32.mrf.mxu0
    %v507 = vpop.f32.mrf.mxu0
    %508 = vdwg.mxu0
    %v510 = vsel %vm345, %v461, 0
    %v513 = vsel %vm465, %v344, 0
    %515 = vmatprep.subr.bf16.mxu0 0
    %516 = vmatpush1.bf16.msra.mxu0 0
    %517 = vmatprep.subr.bf16.mxu0 0
    %518 = vmatpush1.bf16.msra.mxu0 0
    %519 = vmatprep.subr.bf16.mxu0 0
    %520 = vmatpush1.bf16.msra.mxu0 0
    %521 = vmatprep.subr.bf16.mxu0 0
    %522 = vmatpush1.bf16.msra.mxu0 0
    %523 = vmatprep.subr.bf16.mxu0 0
    %524 = vmatpush1.bf16.msra.mxu0 0
    %525 = vmatprep.subr.bf16.mxu0 0
    %526 = vmatpush1.bf16.msra.mxu0 0
    %527 = vmatprep.subr.bf16.mxu0 0
    %528 = vmatpush1.bf16.msra.mxu0 0
    %529 = vmatprep.subr.bf16.mxu0 0
    %530 = vmatpush1.bf16.msra.mxu0 %v513
    %531 = vmatprep.subr.bf16.mxu0 0
    %532 = vmatpush2.bf16.msra.mxu0 0
    %533 = vmatprep.subr.bf16.mxu0 0
    %534 = vmatpush2.bf16.msra.mxu0 0
    %535 = vmatprep.subr.bf16.mxu0 0
    %536 = vmatpush2.bf16.msra.mxu0 0
    %537 = vmatprep.subr.bf16.mxu0 0
    %538 = vmatpush2.bf16.msra.mxu0 0
    %539 = vmatprep.subr.bf16.mxu0 0
    %540 = vmatpush2.bf16.msra.mxu0 0
    %541 = vmatprep.subr.bf16.mxu0 0
    %542 = vmatpush2.bf16.msra.mxu0 0
    %543 = vmatprep.subr.bf16.mxu0 0
    %544 = vmatpush2.bf16.msra.mxu0 0
    %545 = vmatprep.subr.bf16.mxu0 0
    %546 = vmatpush2.bf16.msra.mxu0 0
    %547 = vmatprep.mubr.bf16.mxu0 0
    %548 = vmatmul.mubr.bf16.gmra.mxu0 %v510
    %v549 = vpop.f32.mrf.mxu0
    %v550 = vadd.f32 0.0, %v549
    %v551 = vpop.f32.mrf.mxu0
    %v552 = vpop.f32.mrf.mxu0
    %v553 = vpop.f32.mrf.mxu0
    %554 = vdwg.mxu0
    %556 = vrot.lane.b32.xlu0 %v339, 120
    %v557 = vpop.permute.xlu0 %556
    %559 = vrot.lane.b32.xlu0 %v341, 120
    %v560 = vpop.permute.xlu0 %559
    %v562 = vsel %vm345, %v557, 0
    %v565 = vsel %vm345, %v560, 0
    %567 = vmatprep.subr.bf16.mxu0 0
    %568 = vmatpush1.bf16.xpose.msra.mxu0 0
    %569 = vmatprep.subr.bf16.mxu0 0
    %570 = vmatpush1.bf16.xpose.msra.mxu0 0
    %571 = vmatprep.subr.bf16.mxu0 0
    %572 = vmatpush1.bf16.xpose.msra.mxu0 0
    %573 = vmatprep.subr.bf16.mxu0 0
    %574 = vmatpush1.bf16.xpose.msra.mxu0 0
    %575 = vmatprep.subr.bf16.mxu0 0
    %576 = vmatpush1.bf16.xpose.msra.mxu0 0
    %577 = vmatprep.subr.bf16.mxu0 0
    %578 = vmatpush1.bf16.xpose.msra.mxu0 0
    %579 = vmatprep.subr.bf16.mxu0 0
    %580 = vmatpush1.bf16.xpose.msra.mxu0 0
    %581 = vmatprep.subr.bf16.mxu0 0
    %582 = vmatpush1.bf16.xpose.msra.mxu0 %v565
    %583 = vmatprep.subr.bf16.mxu0 0
    %584 = vmatpush2.bf16.xpose.msra.mxu0 0
    %585 = vmatprep.subr.bf16.mxu0 0
    %586 = vmatpush2.bf16.xpose.msra.mxu0 0
    %587 = vmatprep.subr.bf16.mxu0 0
    %588 = vmatpush2.bf16.xpose.msra.mxu0 0
    %589 = vmatprep.subr.bf16.mxu0 0
    %590 = vmatpush2.bf16.xpose.msra.mxu0 0
    %591 = vmatprep.subr.bf16.mxu0 0
    %592 = vmatpush2.bf16.xpose.msra.mxu0 0
    %593 = vmatprep.subr.bf16.mxu0 0
    %594 = vmatpush2.bf16.xpose.msra.mxu0 0
    %595 = vmatprep.subr.bf16.mxu0 0
    %596 = vmatpush2.bf16.xpose.msra.mxu0 0
    %597 = vmatprep.subr.bf16.mxu0 0
    %598 = vmatpush2.bf16.xpose.msra.mxu0 0
    %599 = vmatprep.mubr.bf16.mxu0 0
    %600 = vmatmul.mubr.bf16.gmra.mxu0 %v562
    %v601 = vpop.f32.mrf.mxu0
    %v602 = vadd.f32 0.0, %v601
    %v603 = vpop.f32.mrf.mxu0
    %v604 = vpop.f32.mrf.mxu0
    %v605 = vpop.f32.mrf.mxu0
    %606 = vdwg.mxu0
    %608 = vrot.lane.b32.xlu0 %v340, 120
    %v609 = vpop.permute.xlu0 %608
    %611 = vrot.lane.b32.xlu0 %v342, 120
    %v612 = vpop.permute.xlu0 %611
    %v614 = vsel %vm345, %v609, 0
    %v617 = vsel %vm345, %v612, 0
    %619 = vmatprep.subr.bf16.mxu0 0
    %620 = vmatpush1.bf16.xpose.msra.mxu0 0
    %621 = vmatprep.subr.bf16.mxu0 0
    %622 = vmatpush1.bf16.xpose.msra.mxu0 0
    %623 = vmatprep.subr.bf16.mxu0 0
    %624 = vmatpush1.bf16.xpose.msra.mxu0 0
    %625 = vmatprep.subr.bf16.mxu0 0
    %626 = vmatpush1.bf16.xpose.msra.mxu0 0
    %627 = vmatprep.subr.bf16.mxu0 0
    %628 = vmatpush1.bf16.xpose.msra.mxu0 0
    %629 = vmatprep.subr.bf16.mxu0 0
    %630 = vmatpush1.bf16.xpose.msra.mxu0 0
    %631 = vmatprep.subr.bf16.mxu0 0
    %632 = vmatpush1.bf16.xpose.msra.mxu0 0
    %633 = vmatprep.subr.bf16.mxu0 0
    %634 = vmatpush1.bf16.xpose.msra.mxu0 %v617
    %635 = vmatprep.subr.bf16.mxu0 0
    %636 = vmatpush2.bf16.xpose.msra.mxu0 0
    %637 = vmatprep.subr.bf16.mxu0 0
    %638 = vmatpush2.bf16.xpose.msra.mxu0 0
    %639 = vmatprep.subr.bf16.mxu0 0
    %640 = vmatpush2.bf16.xpose.msra.mxu0 0
    %641 = vmatprep.subr.bf16.mxu0 0
    %642 = vmatpush2.bf16.xpose.msra.mxu0 0
    %643 = vmatprep.subr.bf16.mxu0 0
    %644 = vmatpush2.bf16.xpose.msra.mxu0 0
    %645 = vmatprep.subr.bf16.mxu0 0
    %646 = vmatpush2.bf16.xpose.msra.mxu0 0
    %647 = vmatprep.subr.bf16.mxu0 0
    %648 = vmatpush2.bf16.xpose.msra.mxu0 0
    %649 = vmatprep.subr.bf16.mxu0 0
    %650 = vmatpush2.bf16.xpose.msra.mxu0 0
    %651 = vmatprep.mubr.bf16.mxu0 0
    %652 = vmatmul.mubr.bf16.gmra.mxu0 %v614
    %v653 = vpop.f32.mrf.mxu0
    %v654 = vadd.f32 0.0, %v653
    %v655 = vpop.f32.mrf.mxu0
    %v656 = vpop.f32.mrf.mxu0
    %v657 = vpop.f32.mrf.mxu0
    %658 = vdwg.mxu0
    %v659 = vsel %vm345, %v602, -inf
    %660 = vmax.xlane.f32.xlu0 %v659
    %v661 = vpop.xlane.xlu0 %660
    %v662 = vsel %vm345, %v654, -inf
    %663 = vmax.xlane.f32.xlu0 %v662
    %v664 = vpop.xlane.xlu0 %663
    %v665 = vsub.f32 %v602, %v661
    %v666 = vsub.f32 %v654, %v664
    %v667 = vmul.f32 %v665, 1.442695
    %v668 = vpow.pop %v667
    %v669 = vmul.f32 %v666, 1.442695
    %v670 = vpow.pop %v669
    %v671 = vsel %vm345, %v668, 0.0
    %672 = vadd.xlane.f32.xlu0 %v671
    %v673 = vpop.xlane.xlu0 %672
    %v674 = vsel %vm345, %v670, 0.0
    %675 = vadd.xlane.f32.xlu0 %v674
    %v676 = vpop.xlane.xlu0 %675
    %v677 = vrcp.pop %v673
    %v678 = vrcp.pop %v676
    %v679 = vmul.f32 %v668, %v677
    %v680 = vmul.f32 %v670, %v678
    %v681 = vpack.c.bf16 %v679, %v679
    %v682 = vpack.c.bf16 %v680, %v680
    %684 = vrot.lane.b32.xlu0 %v343, 120
    %v685 = vpop.permute.xlu0 %684
    %v687 = vsel %vm345, %v681, 0
    %v690 = vsel %vm465, %v685, 0
    %692 = vmatprep.subr.bf16.mxu0 0
    %693 = vmatpush1.bf16.msra.mxu0 0
    %694 = vmatprep.subr.bf16.mxu0 0
    %695 = vmatpush1.bf16.msra.mxu0 0
    %696 = vmatprep.subr.bf16.mxu0 0
    %697 = vmatpush1.bf16.msra.mxu0 0
    %698 = vmatprep.subr.bf16.mxu0 0
    %699 = vmatpush1.bf16.msra.mxu0 0
    %700 = vmatprep.subr.bf16.mxu0 0
    %701 = vmatpush1.bf16.msra.mxu0 0
    %702 = vmatprep.subr.bf16.mxu0 0
    %703 = vmatpush1.bf16.msra.mxu0 0
    %704 = vmatprep.subr.bf16.mxu0 0
    %705 = vmatpush1.bf16.msra.mxu0 0
    %706 = vmatprep.subr.bf16.mxu0 0
    %707 = vmatpush1.bf16.msra.mxu0 %v690
    %708 = vmatprep.subr.bf16.mxu0 0
    %709 = vmatpush2.bf16.msra.mxu0 0
    %710 = vmatprep.subr.bf16.mxu0 0
    %711 = vmatpush2.bf16.msra.mxu0 0
    %712 = vmatprep.subr.bf16.mxu0 0
    %713 = vmatpush2.bf16.msra.mxu0 0
    %714 = vmatprep.subr.bf16.mxu0 0
    %715 = vmatpush2.bf16.msra.mxu0 0
    %716 = vmatprep.subr.bf16.mxu0 0
    %717 = vmatpush2.bf16.msra.mxu0 0
    %718 = vmatprep.subr.bf16.mxu0 0
    %719 = vmatpush2.bf16.msra.mxu0 0
    %720 = vmatprep.subr.bf16.mxu0 0
    %721 = vmatpush2.bf16.msra.mxu0 0
    %722 = vmatprep.subr.bf16.mxu0 0
    %723 = vmatpush2.bf16.msra.mxu0 0
    %724 = vmatprep.mubr.bf16.mxu0 0
    %725 = vmatmul.mubr.bf16.gmra.mxu0 %v687
    %v726 = vpop.f32.mrf.mxu0
    %v727 = vadd.f32 0.0, %v726
    %v728 = vpop.f32.mrf.mxu0
    %v729 = vpop.f32.mrf.mxu0
    %v730 = vpop.f32.mrf.mxu0
    %731 = vdwg.mxu0
    %733 = vrot.lane.b32.xlu0 %v344, 120
    %v734 = vpop.permute.xlu0 %733
    %v736 = vsel %vm345, %v682, 0
    %v739 = vsel %vm465, %v734, 0
    %741 = vmatprep.subr.bf16.mxu0 0
    %742 = vmatpush1.bf16.msra.mxu0 0
    %743 = vmatprep.subr.bf16.mxu0 0
    %744 = vmatpush1.bf16.msra.mxu0 0
    %745 = vmatprep.subr.bf16.mxu0 0
    %746 = vmatpush1.bf16.msra.mxu0 0
    %747 = vmatprep.subr.bf16.mxu0 0
    %748 = vmatpush1.bf16.msra.mxu0 0
    %749 = vmatprep.subr.bf16.mxu0 0
    %750 = vmatpush1.bf16.msra.mxu0 0
    %751 = vmatprep.subr.bf16.mxu0 0
    %752 = vmatpush1.bf16.msra.mxu0 0
    %753 = vmatprep.subr.bf16.mxu0 0
    %754 = vmatpush1.bf16.msra.mxu0 0
    %755 = vmatprep.subr.bf16.mxu0 0
    %756 = vmatpush1.bf16.msra.mxu0 %v739
    %757 = vmatprep.subr.bf16.mxu0 0
    %758 = vmatpush2.bf16.msra.mxu0 0
    %759 = vmatprep.subr.bf16.mxu0 0
    %760 = vmatpush2.bf16.msra.mxu0 0
    %761 = vmatprep.subr.bf16.mxu0 0
    %762 = vmatpush2.bf16.msra.mxu0 0
    %763 = vmatprep.subr.bf16.mxu0 0
    %764 = vmatpush2.bf16.msra.mxu0 0
    %765 = vmatprep.subr.bf16.mxu0 0
    %766 = vmatpush2.bf16.msra.mxu0 0
    %767 = vmatprep.subr.bf16.mxu0 0
    %768 = vmatpush2.bf16.msra.mxu0 0
    %769 = vmatprep.subr.bf16.mxu0 0
    %770 = vmatpush2.bf16.msra.mxu0 0
    %771 = vmatprep.subr.bf16.mxu0 0
    %772 = vmatpush2.bf16.msra.mxu0 0
    %773 = vmatprep.mubr.bf16.mxu0 0
    %774 = vmatmul.mubr.bf16.gmra.mxu0 %v736
    %v775 = vpop.f32.mrf.mxu0
    %v776 = vadd.f32 0.0, %v775
    %v777 = vpop.f32.mrf.mxu0
    %v778 = vpop.f32.mrf.mxu0
    %v779 = vpop.f32.mrf.mxu0
    %780 = vdwg.mxu0
    %781 = vrot.lane.b32.xlu0 %v339, 112
    %v782 = vpop.permute.xlu0 %781
    %783 = vrot.lane.b32.xlu0 %v341, 112
    %v784 = vpop.permute.xlu0 %783
    %v786 = vsel %vm345, %v782, 0
    %v789 = vsel %vm345, %v784, 0
    %791 = vmatprep.subr.bf16.mxu0 0
    %792 = vmatpush1.bf16.xpose.msra.mxu0 0
    %793 = vmatprep.subr.bf16.mxu0 0
    %794 = vmatpush1.bf16.xpose.msra.mxu0 0
    %795 = vmatprep.subr.bf16.mxu0 0
    %796 = vmatpush1.bf16.xpose.msra.mxu0 0
    %797 = vmatprep.subr.bf16.mxu0 0
    %798 = vmatpush1.bf16.xpose.msra.mxu0 0
    %799 = vmatprep.subr.bf16.mxu0 0
    %800 = vmatpush1.bf16.xpose.msra.mxu0 0
    %801 = vmatprep.subr.bf16.mxu0 0
    %802 = vmatpush1.bf16.xpose.msra.mxu0 0
    %803 = vmatprep.subr.bf16.mxu0 0
    %804 = vmatpush1.bf16.xpose.msra.mxu0 0
    %805 = vmatprep.subr.bf16.mxu0 0
    %806 = vmatpush1.bf16.xpose.msra.mxu0 %v789
    %807 = vmatprep.subr.bf16.mxu0 0
    %808 = vmatpush2.bf16.xpose.msra.mxu0 0
    %809 = vmatprep.subr.bf16.mxu0 0
    %810 = vmatpush2.bf16.xpose.msra.mxu0 0
    %811 = vmatprep.subr.bf16.mxu0 0
    %812 = vmatpush2.bf16.xpose.msra.mxu0 0
    %813 = vmatprep.subr.bf16.mxu0 0
    %814 = vmatpush2.bf16.xpose.msra.mxu0 0
    %815 = vmatprep.subr.bf16.mxu0 0
    %816 = vmatpush2.bf16.xpose.msra.mxu0 0
    %817 = vmatprep.subr.bf16.mxu0 0
    %818 = vmatpush2.bf16.xpose.msra.mxu0 0
    %819 = vmatprep.subr.bf16.mxu0 0
    %820 = vmatpush2.bf16.xpose.msra.mxu0 0
    %821 = vmatprep.subr.bf16.mxu0 0
    %822 = vmatpush2.bf16.xpose.msra.mxu0 0
    %823 = vmatprep.mubr.bf16.mxu0 0
    %824 = vmatmul.mubr.bf16.gmra.mxu0 %v786
    %v825 = vpop.f32.mrf.mxu0
    %v826 = vadd.f32 0.0, %v825
    %v827 = vpop.f32.mrf.mxu0
    %v828 = vpop.f32.mrf.mxu0
    %v829 = vpop.f32.mrf.mxu0
    %830 = vdwg.mxu0
    %831 = vrot.lane.b32.xlu0 %v340, 112
    %v832 = vpop.permute.xlu0 %831
    %833 = vrot.lane.b32.xlu0 %v342, 112
    %v834 = vpop.permute.xlu0 %833
    %v836 = vsel %vm345, %v832, 0
    %v839 = vsel %vm345, %v834, 0
    %841 = vmatprep.subr.bf16.mxu0 0
    %842 = vmatpush1.bf16.xpose.msra.mxu0 0
    %843 = vmatprep.subr.bf16.mxu0 0
    %844 = vmatpush1.bf16.xpose.msra.mxu0 0
    %845 = vmatprep.subr.bf16.mxu0 0
    %846 = vmatpush1.bf16.xpose.msra.mxu0 0
    %847 = vmatprep.subr.bf16.mxu0 0
    %848 = vmatpush1.bf16.xpose.msra.mxu0 0
    %849 = vmatprep.subr.bf16.mxu0 0
    %850 = vmatpush1.bf16.xpose.msra.mxu0 0
    %851 = vmatprep.subr.bf16.mxu0 0
    %852 = vmatpush1.bf16.xpose.msra.mxu0 0
    %853 = vmatprep.subr.bf16.mxu0 0
    %854 = vmatpush1.bf16.xpose.msra.mxu0 0
    %855 = vmatprep.subr.bf16.mxu0 0
    %856 = vmatpush1.bf16.xpose.msra.mxu0 %v839
    %857 = vmatprep.subr.bf16.mxu0 0
    %858 = vmatpush2.bf16.xpose.msra.mxu0 0
    %859 = vmatprep.subr.bf16.mxu0 0
    %860 = vmatpush2.bf16.xpose.msra.mxu0 0
    %861 = vmatprep.subr.bf16.mxu0 0
    %862 = vmatpush2.bf16.xpose.msra.mxu0 0
    %863 = vmatprep.subr.bf16.mxu0 0
    %864 = vmatpush2.bf16.xpose.msra.mxu0 0
    %865 = vmatprep.subr.bf16.mxu0 0
    %866 = vmatpush2.bf16.xpose.msra.mxu0 0
    %867 = vmatprep.subr.bf16.mxu0 0
    %868 = vmatpush2.bf16.xpose.msra.mxu0 0
    %869 = vmatprep.subr.bf16.mxu0 0
    %870 = vmatpush2.bf16.xpose.msra.mxu0 0
    %871 = vmatprep.subr.bf16.mxu0 0
    %872 = vmatpush2.bf16.xpose.msra.mxu0 0
    %873 = vmatprep.mubr.bf16.mxu0 0
    %874 = vmatmul.mubr.bf16.gmra.mxu0 %v836
    %v875 = vpop.f32.mrf.mxu0
    %v876 = vadd.f32 0.0, %v875
    %v877 = vpop.f32.mrf.mxu0
    %v878 = vpop.f32.mrf.mxu0
    %v879 = vpop.f32.mrf.mxu0
    %880 = vdwg.mxu0
    %v881 = vsel %vm345, %v826, -inf
    %882 = vmax.xlane.f32.xlu0 %v881
    %v883 = vpop.xlane.xlu0 %882
    %v884 = vsel %vm345, %v876, -inf
    %885 = vmax.xlane.f32.xlu0 %v884
    %v886 = vpop.xlane.xlu0 %885
    %v887 = vsub.f32 %v826, %v883
    %v888 = vsub.f32 %v876, %v886
    %v889 = vmul.f32 %v887, 1.442695
    %v890 = vpow.pop %v889
    %v891 = vmul.f32 %v888, 1.442695
    %v892 = vpow.pop %v891
    %v893 = vsel %vm345, %v890, 0.0
    %894 = vadd.xlane.f32.xlu0 %v893
    %v895 = vpop.xlane.xlu0 %894
    %v896 = vsel %vm345, %v892, 0.0
    %897 = vadd.xlane.f32.xlu0 %v896
    %v898 = vpop.xlane.xlu0 %897
    %v899 = vrcp.pop %v895
    %v900 = vrcp.pop %v898
    %v901 = vmul.f32 %v890, %v899
    %v902 = vmul.f32 %v892, %v900
    %v903 = vpack.c.bf16 %v901, %v901
    %v904 = vpack.c.bf16 %v902, %v902
    %905 = vrot.lane.b32.xlu0 %v343, 112
    %v906 = vpop.permute.xlu0 %905
    %v908 = vsel %vm345, %v903, 0
    %v911 = vsel %vm465, %v906, 0
    %913 = vmatprep.subr.bf16.mxu0 0
    %914 = vmatpush1.bf16.msra.mxu0 0
    %915 = vmatprep.subr.bf16.mxu0 0
    %916 = vmatpush1.bf16.msra.mxu0 0
    %917 = vmatprep.subr.bf16.mxu0 0
    %918 = vmatpush1.bf16.msra.mxu0 0
    %919 = vmatprep.subr.bf16.mxu0 0
    %920 = vmatpush1.bf16.msra.mxu0 0
    %921 = vmatprep.subr.bf16.mxu0 0
    %922 = vmatpush1.bf16.msra.mxu0 0
    %923 = vmatprep.subr.bf16.mxu0 0
    %924 = vmatpush1.bf16.msra.mxu0 0
    %925 = vmatprep.subr.bf16.mxu0 0
    %926 = vmatpush1.bf16.msra.mxu0 0
    %927 = vmatprep.subr.bf16.mxu0 0
    %928 = vmatpush1.bf16.msra.mxu0 %v911
    %929 = vmatprep.subr.bf16.mxu0 0
    %930 = vmatpush2.bf16.msra.mxu0 0
    %931 = vmatprep.subr.bf16.mxu0 0
    %932 = vmatpush2.bf16.msra.mxu0 0
    %933 = vmatprep.subr.bf16.mxu0 0
    %934 = vmatpush2.bf16.msra.mxu0 0
    %935 = vmatprep.subr.bf16.mxu0 0
    %936 = vmatpush2.bf16.msra.mxu0 0
    %937 = vmatprep.subr.bf16.mxu0 0
    %938 = vmatpush2.bf16.msra.mxu0 0
    %939 = vmatprep.subr.bf16.mxu0 0
    %940 = vmatpush2.bf16.msra.mxu0 0
    %941 = vmatprep.subr.bf16.mxu0 0
    %942 = vmatpush2.bf16.msra.mxu0 0
    %943 = vmatprep.subr.bf16.mxu0 0
    %944 = vmatpush2.bf16.msra.mxu0 0
    %945 = vmatprep.mubr.bf16.mxu0 0
    %946 = vmatmul.mubr.bf16.gmra.mxu0 %v908
    %v947 = vpop.f32.mrf.mxu0
    %v948 = vadd.f32 0.0, %v947
    %v949 = vpop.f32.mrf.mxu0
    %v950 = vpop.f32.mrf.mxu0
    %v951 = vpop.f32.mrf.mxu0
    %952 = vdwg.mxu0
    %953 = vrot.lane.b32.xlu0 %v344, 112
    %v954 = vpop.permute.xlu0 %953
    %v956 = vsel %vm345, %v904, 0
    %v959 = vsel %vm465, %v954, 0
    %961 = vmatprep.subr.bf16.mxu0 0
    %962 = vmatpush1.bf16.msra.mxu0 0
    %963 = vmatprep.subr.bf16.mxu0 0
    %964 = vmatpush1.bf16.msra.mxu0 0
    %965 = vmatprep.subr.bf16.mxu0 0
    %966 = vmatpush1.bf16.msra.mxu0 0
    %967 = vmatprep.subr.bf16.mxu0 0
    %968 = vmatpush1.bf16.msra.mxu0 0
    %969 = vmatprep.subr.bf16.mxu0 0
    %970 = vmatpush1.bf16.msra.mxu0 0
    %971 = vmatprep.subr.bf16.mxu0 0
    %972 = vmatpush1.bf16.msra.mxu0 0
    %973 = vmatprep.subr.bf16.mxu0 0
    %974 = vmatpush1.bf16.msra.mxu0 0
    %975 = vmatprep.subr.bf16.mxu0 0
    %976 = vmatpush1.bf16.msra.mxu0 %v959
    %977 = vmatprep.subr.bf16.mxu0 0
    %978 = vmatpush2.bf16.msra.mxu0 0
    %979 = vmatprep.subr.bf16.mxu0 0
    %980 = vmatpush2.bf16.msra.mxu0 0
    %981 = vmatprep.subr.bf16.mxu0 0
    %982 = vmatpush2.bf16.msra.mxu0 0
    %983 = vmatprep.subr.bf16.mxu0 0
    %984 = vmatpush2.bf16.msra.mxu0 0
    %985 = vmatprep.subr.bf16.mxu0 0
    %986 = vmatpush2.bf16.msra.mxu0 0
    %987 = vmatprep.subr.bf16.mxu0 0
    %988 = vmatpush2.bf16.msra.mxu0 0
    %989 = vmatprep.subr.bf16.mxu0 0
    %990 = vmatpush2.bf16.msra.mxu0 0
    %991 = vmatprep.subr.bf16.mxu0 0
    %992 = vmatpush2.bf16.msra.mxu0 0
    %993 = vmatprep.mubr.bf16.mxu0 0
    %994 = vmatmul.mubr.bf16.gmra.mxu0 %v956
    %v995 = vpop.f32.mrf.mxu0
    %v996 = vadd.f32 0.0, %v995
    %v997 = vpop.f32.mrf.mxu0
    %v998 = vpop.f32.mrf.mxu0
    %v999 = vpop.f32.mrf.mxu0
    %1000 = vdwg.mxu0
    %1001 = vrot.lane.b32.xlu0 %v339, 104
    %v1002 = vpop.permute.xlu0 %1001
    %1003 = vrot.lane.b32.xlu0 %v341, 104
    %v1004 = vpop.permute.xlu0 %1003
    %v1006 = vsel %vm345, %v1002, 0
    %v1009 = vsel %vm345, %v1004, 0
    %1011 = vmatprep.subr.bf16.mxu0 0
    %1012 = vmatpush1.bf16.xpose.msra.mxu0 0
    %1013 = vmatprep.subr.bf16.mxu0 0
    %1014 = vmatpush1.bf16.xpose.msra.mxu0 0
    %1015 = vmatprep.subr.bf16.mxu0 0
    %1016 = vmatpush1.bf16.xpose.msra.mxu0 0
    %1017 = vmatprep.subr.bf16.mxu0 0
    %1018 = vmatpush1.bf16.xpose.msra.mxu0 0
    %1019 = vmatprep.subr.bf16.mxu0 0
    %1020 = vmatpush1.bf16.xpose.msra.mxu0 0
    %1021 = vmatprep.subr.bf16.mxu0 0
    %1022 = vmatpush1.bf16.xpose.msra.mxu0 0
    %1023 = vmatprep.subr.bf16.mxu0 0
    %1024 = vmatpush1.bf16.xpose.msra.mxu0 0
    %1025 = vmatprep.subr.bf16.mxu0 0
    %1026 = vmatpush1.bf16.xpose.msra.mxu0 %v1009
    %1027 = vmatprep.subr.bf16.mxu0 0
    %1028 = vmatpush2.bf16.xpose.msra.mxu0 0
    %1029 = vmatprep.subr.bf16.mxu0 0
    %1030 = vmatpush2.bf16.xpose.msra.mxu0 0
    %1031 = vmatprep.subr.bf16.mxu0 0
    %1032 = vmatpush2.bf16.xpose.msra.mxu0 0
    %1033 = vmatprep.subr.bf16.mxu0 0
    %1034 = vmatpush2.bf16.xpose.msra.mxu0 0
    %1035 = vmatprep.subr.bf16.mxu0 0
    %1036 = vmatpush2.bf16.xpose.msra.mxu0 0
    %1037 = vmatprep.subr.bf16.mxu0 0
    %1038 = vmatpush2.bf16.xpose.msra.mxu0 0
    %1039 = vmatprep.subr.bf16.mxu0 0
    %1040 = vmatpush2.bf16.xpose.msra.mxu0 0
    %1041 = vmatprep.subr.bf16.mxu0 0
    %1042 = vmatpush2.bf16.xpose.msra.mxu0 0
    %1043 = vmatprep.mubr.bf16.mxu0 0
    %1044 = vmatmul.mubr.bf16.gmra.mxu0 %v1006
    %v1045 = vpop.f32.mrf.mxu0
    %v1046 = vadd.f32 0.0, %v1045
    %v1047 = vpop.f32.mrf.mxu0
    %v1048 = vpop.f32.mrf.mxu0
    %v1049 = vpop.f32.mrf.mxu0
    %1050 = vdwg.mxu0
    %1051 = vrot.lane.b32.xlu0 %v340, 104
    %v1052 = vpop.permute.xlu0 %1051
    %1053 = vrot.lane.b32.xlu0 %v342, 104
    %v1054 = vpop.permute.xlu0 %1053
    %v1056 = vsel %vm345, %v1052, 0
    %v1059 = vsel %vm345, %v1054, 0
    %1061 = vmatprep.subr.bf16.mxu0 0
    %1062 = vmatpush1.bf16.xpose.msra.mxu0 0
    %1063 = vmatprep.subr.bf16.mxu0 0
    %1064 = vmatpush1.bf16.xpose.msra.mxu0 0
    %1065 = vmatprep.subr.bf16.mxu0 0
    %1066 = vmatpush1.bf16.xpose.msra.mxu0 0
    %1067 = vmatprep.subr.bf16.mxu0 0
    %1068 = vmatpush1.bf16.xpose.msra.mxu0 0
    %1069 = vmatprep.subr.bf16.mxu0 0
    %1070 = vmatpush1.bf16.xpose.msra.mxu0 0
    %1071 = vmatprep.subr.bf16.mxu0 0
    %1072 = vmatpush1.bf16.xpose.msra.mxu0 0
    %1073 = vmatprep.subr.bf16.mxu0 0
    %1074 = vmatpush1.bf16.xpose.msra.mxu0 0
    %1075 = vmatprep.subr.bf16.mxu0 0
    %1076 = vmatpush1.bf16.xpose.msra.mxu0 %v1059
    %1077 = vmatprep.subr.bf16.mxu0 0
    %1078 = vmatpush2.bf16.xpose.msra.mxu0 0
    %1079 = vmatprep.subr.bf16.mxu0 0
    %1080 = vmatpush2.bf16.xpose.msra.mxu0 0
    %1081 = vmatprep.subr.bf16.mxu0 0
    %1082 = vmatpush2.bf16.xpose.msra.mxu0 0
    %1083 = vmatprep.subr.bf16.mxu0 0
    %1084 = vmatpush2.bf16.xpose.msra.mxu0 0
    %1085 = vmatprep.subr.bf16.mxu0 0
    %1086 = vmatpush2.bf16.xpose.msra.mxu0 0
    %1087 = vmatprep.subr.bf16.mxu0 0
    %1088 = vmatpush2.bf16.xpose.msra.mxu0 0
    %1089 = vmatprep.subr.bf16.mxu0 0
    %1090 = vmatpush2.bf16.xpose.msra.mxu0 0
    %1091 = vmatprep.subr.bf16.mxu0 0
    %1092 = vmatpush2.bf16.xpose.msra.mxu0 0
    %1093 = vmatprep.mubr.bf16.mxu0 0
    %1094 = vmatmul.mubr.bf16.gmra.mxu0 %v1056
    %v1095 = vpop.f32.mrf.mxu0
    %v1096 = vadd.f32 0.0, %v1095
    %v1097 = vpop.f32.mrf.mxu0
    %v1098 = vpop.f32.mrf.mxu0
    %v1099 = vpop.f32.mrf.mxu0
    %1100 = vdwg.mxu0
    %v1101 = vsel %vm345, %v1046, -inf
    %1102 = vmax.xlane.f32.xlu0 %v1101
    %v1103 = vpop.xlane.xlu0 %1102
    %v1104 = vsel %vm345, %v1096, -inf
    %1105 = vmax.xlane.f32.xlu0 %v1104
    %v1106 = vpop.xlane.xlu0 %1105
    %v1107 = vsub.f32 %v1046, %v1103
    %v1108 = vsub.f32 %v1096, %v1106
    %v1109 = vmul.f32 %v1107, 1.442695
    %v1110 = vpow.pop %v1109
    %v1111 = vmul.f32 %v1108, 1.442695
    %v1112 = vpow.pop %v1111
    %v1113 = vsel %vm345, %v1110, 0.0
    %1114 = vadd.xlane.f32.xlu0 %v1113
    %v1115 = vpop.xlane.xlu0 %1114
    %v1116 = vsel %vm345, %v1112, 0.0
    %1117 = vadd.xlane.f32.xlu0 %v1116
    %v1118 = vpop.xlane.xlu0 %1117
    %v1119 = vrcp.pop %v1115
    %v1120 = vrcp.pop %v1118
    %v1121 = vmul.f32 %v1110, %v1119
    %v1122 = vmul.f32 %v1112, %v1120
    %v1123 = vpack.c.bf16 %v1121, %v1121
    %v1124 = vpack.c.bf16 %v1122, %v1122
    %1125 = vrot.lane.b32.xlu0 %v343, 104
    %v1126 = vpop.permute.xlu0 %1125
    %v1128 = vsel %vm345, %v1123, 0
    %v1131 = vsel %vm465, %v1126, 0
    %1133 = vmatprep.subr.bf16.mxu0 0
    %1134 = vmatpush1.bf16.msra.mxu0 0
    %1135 = vmatprep.subr.bf16.mxu0 0
    %1136 = vmatpush1.bf16.msra.mxu0 0
    %1137 = vmatprep.subr.bf16.mxu0 0
    %1138 = vmatpush1.bf16.msra.mxu0 0
    %1139 = vmatprep.subr.bf16.mxu0 0
    %1140 = vmatpush1.bf16.msra.mxu0 0
    %1141 = vmatprep.subr.bf16.mxu0 0
    %1142 = vmatpush1.bf16.msra.mxu0 0
    %1143 = vmatprep.subr.bf16.mxu0 0
    %1144 = vmatpush1.bf16.msra.mxu0 0
    %1145 = vmatprep.subr.bf16.mxu0 0
    %1146 = vmatpush1.bf16.msra.mxu0 0
    %1147 = vmatprep.subr.bf16.mxu0 0
    %1148 = vmatpush1.bf16.msra.mxu0 %v1131
    %1149 = vmatprep.subr.bf16.mxu0 0
    %1150 = vmatpush2.bf16.msra.mxu0 0
    %1151 = vmatprep.subr.bf16.mxu0 0
    %1152 = vmatpush2.bf16.msra.mxu0 0
    %1153 = vmatprep.subr.bf16.mxu0 0
    %1154 = vmatpush2.bf16.msra.mxu0 0
    %1155 = vmatprep.subr.bf16.mxu0 0
    %1156 = vmatpush2.bf16.msra.mxu0 0
    %1157 = vmatprep.subr.bf16.mxu0 0
    %1158 = vmatpush2.bf16.msra.mxu0 0
    %1159 = vmatprep.subr.bf16.mxu0 0
    %1160 = vmatpush2.bf16.msra.mxu0 0
    %1161 = vmatprep.subr.bf16.mxu0 0
    %1162 = vmatpush2.bf16.msra.mxu0 0
    %1163 = vmatprep.subr.bf16.mxu0 0
    %1164 = vmatpush2.bf16.msra.mxu0 0
    %1165 = vmatprep.mubr.bf16.mxu0 0
    %1166 = vmatmul.mubr.bf16.gmra.mxu0 %v1128
    %v1167 = vpop.f32.mrf.mxu0
    %v1168 = vadd.f32 0.0, %v1167
    %v1169 = vpop.f32.mrf.mxu0
    %v1170 = vpop.f32.mrf.mxu0
    %v1171 = vpop.f32.mrf.mxu0
    %1172 = vdwg.mxu0
    %1173 = vrot.lane.b32.xlu0 %v344, 104
    %v1174 = vpop.permute.xlu0 %1173
    %v1176 = vsel %vm345, %v1124, 0
    %v1179 = vsel %vm465, %v1174, 0
    %1181 = vmatprep.subr.bf16.mxu0 0
    %1182 = vmatpush1.bf16.msra.mxu0 0
    %1183 = vmatprep.subr.bf16.mxu0 0
    %1184 = vmatpush1.bf16.msra.mxu0 0
    %1185 = vmatprep.subr.bf16.mxu0 0
    %1186 = vmatpush1.bf16.msra.mxu0 0
    %1187 = vmatprep.subr.bf16.mxu0 0
    %1188 = vmatpush1.bf16.msra.mxu0 0
    %1189 = vmatprep.subr.bf16.mxu0 0
    %1190 = vmatpush1.bf16.msra.mxu0 0
    %1191 = vmatprep.subr.bf16.mxu0 0
    %1192 = vmatpush1.bf16.msra.mxu0 0
    %1193 = vmatprep.subr.bf16.mxu0 0
    %1194 = vmatpush1.bf16.msra.mxu0 0
    %1195 = vmatprep.subr.bf16.mxu0 0
    %1196 = vmatpush1.bf16.msra.mxu0 %v1179
    %1197 = vmatprep.subr.bf16.mxu0 0
    %1198 = vmatpush2.bf16.msra.mxu0 0
    %1199 = vmatprep.subr.bf16.mxu0 0
    %1200 = vmatpush2.bf16.msra.mxu0 0
    %1201 = vmatprep.subr.bf16.mxu0 0
    %1202 = vmatpush2.bf16.msra.mxu0 0
    %1203 = vmatprep.subr.bf16.mxu0 0
    %1204 = vmatpush2.bf16.msra.mxu0 0
    %1205 = vmatprep.subr.bf16.mxu0 0
    %1206 = vmatpush2.bf16.msra.mxu0 0
    %1207 = vmatprep.subr.bf16.mxu0 0
    %1208 = vmatpush2.bf16.msra.mxu0 0
    %1209 = vmatprep.subr.bf16.mxu0 0
    %1210 = vmatpush2.bf16.msra.mxu0 0
    %1211 = vmatprep.subr.bf16.mxu0 0
    %1212 = vmatpush2.bf16.msra.mxu0 0
    %1213 = vmatprep.mubr.bf16.mxu0 0
    %1214 = vmatmul.mubr.bf16.gmra.mxu0 %v1176
    %v1215 = vpop.f32.mrf.mxu0
    %v1216 = vadd.f32 0.0, %v1215
    %v1217 = vpop.f32.mrf.mxu0
    %v1218 = vpop.f32.mrf.mxu0
    %v1219 = vpop.f32.mrf.mxu0
    %1220 = vdwg.mxu0
    %1223 = vrot.lane.b32.xlu0 %v727, 8
    %v1224 = vpop.permute.xlu0 %1223
    %1225 = vrot.lane.b32.xlu0 %v776, 8
    %v1226 = vpop.permute.xlu0 %1225
    %1231 = vrot.lane.b32.xlu0 %v948, 16
    %v1232 = vpop.permute.xlu0 %1231
    %1233 = vrot.lane.b32.xlu0 %v996, 16
    %v1234 = vpop.permute.xlu0 %1233
    %1239 = vrot.lane.b32.xlu0 %v1168, 24
    %v1240 = vpop.permute.xlu0 %1239
    %1241 = vrot.lane.b32.xlu0 %v1216, 24
    %v1242 = vpop.permute.xlu0 %1241
    %v1245 = vsel %vm345, %v504, %v1224
    %v1246 = vsel %vm345, %v550, %v1226
    %vm1247 = vcmask 130048
    %v1248 = vsel %vm1247, %v1245, %v1232
    %v1249 = vsel %vm1247, %v1246, %v1234
    %vm1250 = vcmask 195584
    %v1251 = vsel %vm1250, %v1248, %v1240
    %v1252 = vsel %vm1250, %v1249, %v1242
    %v1253 = vpack.c.bf16 %v1252, %v1251
    %v1254 = vld [vmem:[#allocation13] sm:$0xf]
    %v1255 = vld [vmem:[#allocation13 + $0x4] sm:$0xf]
    %v1256 = vld [vmem:[#allocation13 + $0x8] sm:$0xf]
    %v1257 = vld [vmem:[#allocation13 + $0xc] sm:$0xf]
    %v1262 = vunpack.c.l.b16 %v1254
    %v1263 = vunpack.c.l.b16 %v1255
    %v1264 = vunpack.c.l.b16 %v1256
    %v1265 = vunpack.c.l.b16 %v1257
    %v1266 = vpack.c.b16 %v1263, %v1262
    %v1267 = vpack.c.b16 %v1265, %v1264
    %v1269 = vsel %vm144, %v1253, 0
    %v1272 = vsel %vm144, %v1266, 0
    %v1275 = vsel %vm144, %v1267, 0
    %1277 = vmatprep.subr.bf16.mxu0 0
    %1278 = vmatpush1.bf16.xpose.msra.mxu0 0
    %1279 = vmatprep.subr.bf16.mxu0 0
    %1280 = vmatpush1.bf16.xpose.msra.mxu0 0
    %1281 = vmatprep.subr.bf16.mxu0 0
    %1282 = vmatpush1.bf16.xpose.msra.mxu0 0
    %1283 = vmatprep.subr.bf16.mxu0 0
    %1284 = vmatpush1.bf16.xpose.msra.mxu0 0
    %1285 = vmatprep.subr.bf16.mxu0 0
    %1286 = vmatpush1.bf16.xpose.msra.mxu0 0
    %1287 = vmatprep.subr.bf16.mxu0 0
    %1288 = vmatpush1.bf16.xpose.msra.mxu0 0
    %1289 = vmatprep.subr.bf16.mxu0 0
    %1290 = vmatpush1.bf16.xpose.msra.mxu0 %v1275
    %1291 = vmatprep.subr.bf16.mxu0 0
    %1292 = vmatpush1.bf16.xpose.msra.mxu0 %v1272
    %1293 = vmatprep.subr.bf16.mxu0 0
    %1294 = vmatpush2.bf16.xpose.msra.mxu0 0
    %1295 = vmatprep.subr.bf16.mxu0 0
    %1296 = vmatpush2.bf16.xpose.msra.mxu0 0
    %1297 = vmatprep.subr.bf16.mxu0 0
    %1298 = vmatpush2.bf16.xpose.msra.mxu0 0
    %1299 = vmatprep.subr.bf16.mxu0 0
    %1300 = vmatpush2.bf16.xpose.msra.mxu0 0
    %1301 = vmatprep.subr.bf16.mxu0 0
    %1302 = vmatpush2.bf16.xpose.msra.mxu0 0
    %1303 = vmatprep.subr.bf16.mxu0 0
    %1304 = vmatpush2.bf16.xpose.msra.mxu0 0
    %1305 = vmatprep.subr.bf16.mxu0 0
    %1306 = vmatpush2.bf16.xpose.msra.mxu0 0
    %1307 = vmatprep.subr.bf16.mxu0 0
    %1308 = vmatpush2.bf16.xpose.msra.mxu0 0
    %1309 = vmatprep.mubr.bf16.mxu0 0
    %1310 = vmatmul.mubr.bf16.gmra.mxu0 %v1269
    %v1311 = vpop.f32.mrf.mxu0
    %v1312 = vadd.f32 0.0, %v1311
    %v1313 = vpop.f32.mrf.mxu0
    %v1314 = vpop.f32.mrf.mxu0
    %v1315 = vadd.f32 0.0, %v1314
    %v1316 = vpop.f32.mrf.mxu0
    %1317 = vdwg.mxu0
    %1318 = vst.msk [vmem:[#allocation14] sm:$0xff] %vm144, %v1312
    %1319 = vst.msk [vmem:[#allocation14 + $0x8] sm:$0xff] %vm144, %v1315
    // Predicated region
    $region58: #{tpu_custom_call.1} parent=1 // pred_check
      _
    $region59: #{tpu_custom_call.1} parent=1 // pred_check_branch
      %1321 = sbr.rel (0) target = $region61
    $region60: #{tpu_custom_call.1} parent=1 // pred_region
      %s1323 = ssub.s32 256, 256
      %1324 = vsyncadd [#allocation4], %s1323
      %s1325 = sshll.u32 [#allocation14], 4
      %s1326 = int_to_ptr.vmem [resolvable:$true] %s1325
      %1331 = dma.vmem_to_hbm [thread:$0]  %s1326, 256, %s7, [#allocation4], 128, 128, 8
    $region61: #{tpu_custom_call.1} parent=1 // pred_fallthru
      _
    // Predicated region
    $region62: #{tpu_custom_call.1} parent=1 // pred_check
      _
    $region63: #{tpu_custom_call.1} parent=1 // pred_check_branch
      %1333 = sbr.rel (0) target = $region65
    $region64: #{tpu_custom_call.1} parent=1 // pred_region
      %1334 = dma.done [#allocation4], 256
    $region65: #{tpu_custom_call.1} parent=1 // pred_fallthru
      _
    %1335 = vsyncpa [#allocation3], 1
    %1336 = vsyncpa [#allocation6], 1
    %1337 = vsyncpa [#allocation9], 1
    %1338 = vsyncpa [#allocation12], 1
    %1339 = vsyncpa [#allocation4], 1

</llo_original>
